<compile_context>
chip_gen: v7x
topology: tpu7x:2x2x1
jax: 0.10.0
libtpu: 0.0.40
codegen_flags: <defaults>
</compile_context>

<pallas_src>
import jax
import jax.numpy as jnp
from jax.experimental import pallas as pl
from jax.experimental.pallas import tpu as pltpu

IN_FEATURES = 12 * 8 * 8      # 768
HIDDEN = 12 * 8 * 4           # 384
OUT_FEATURES = 1

# Batch tile: multiple of 8 (sublane) and 128 (MXU-friendly M).  1024 rows of
# f32 x is 3 MiB per buffer; double-buffered + intermediates fits the default
# scoped-VMEM budget on every current chip.
MAX_TILE_B = 1024


def _round_up(n, m):
    return ((n + m - 1) // m) * m


def _simple_ff_kernel(x_ref, w1_ref, b1_ref, w2_ref, b2_ref, o_ref):
    # x_ref : (TB, 768)  input dtype     w1_ref: (768, 384) bf16 (resident)
    # b1_ref: (1, 384)   f32 (resident)  w2_ref: (1, 384)   f32 (W2 as a lane row, resident)
    # b2_ref: (1, 1)     f32 in SMEM     o_ref : (TB, 1)    f32
    x = x_ref[...].astype(jnp.bfloat16)                       # mirrors x.float(), bf16 for MXU
    h = jnp.dot(x, w1_ref[...], preferred_element_type=jnp.float32) + b1_ref[...]
    h = jnp.maximum(h, 0.0)                                   # ReLU (VPU)
    # N=1 second layer off the MXU: VPU multiply + XLU lane-reduce + EUP tanh.
    y = jnp.sum(h * w2_ref[...], axis=-1, keepdims=True) + b2_ref[0, 0]
    o_ref[...] = jnp.tanh(y)


def simple_ff(x, w1, b1, w2, b2, *, max_tile_b=MAX_TILE_B):
    """x: (B, 12, 8, 8) any float/int dtype -> (B, 1) float32."""
    B = x.shape[0]
    x_flat = x.reshape(B, IN_FEATURES)              # row-major == nn.Flatten on NCHW

    # Tile size: multiple of 128, capped; pad batch to a whole number of tiles.
    tb = min(max_tile_b, _round_up(B, 128))
    b_pad = _round_up(B, tb)
    if b_pad != B:
        x_flat = jnp.pad(x_flat, ((0, b_pad - B), (0, 0)))
    grid = (b_pad // tb,)

    # One-time parameter prep (tiny): bf16 weights for the MXU, W2 as a lane row.
    w1_bf16 = w1.astype(jnp.bfloat16)
    b1_row = b1.reshape(1, HIDDEN).astype(jnp.float32)
    w2_row = w2.reshape(1, HIDDEN).astype(jnp.float32)
    b2_s = b2.reshape(1, 1).astype(jnp.float32)

    cost = pl.CostEstimate(
        flops=2 * b_pad * IN_FEATURES * HIDDEN + 2 * b_pad * HIDDEN,
        transcendentals=b_pad,
        bytes_accessed=(b_pad * IN_FEATURES * x_flat.dtype.itemsize
                        + w1_bf16.size * 2
                        + (b1_row.size + w2_row.size + b2_s.size) * 4
                        + b_pad * OUT_FEATURES * 4),
    )

    out = pl.pallas_call(
        _simple_ff_kernel,
        out_shape=jax.ShapeDtypeStruct((b_pad, OUT_FEATURES), jnp.float32),
        grid=grid,
        in_specs=[
            pl.BlockSpec((tb, IN_FEATURES), lambda i: (i, 0)),       # x: streamed tiles
            pl.BlockSpec((IN_FEATURES, HIDDEN), lambda i: (0, 0)),   # W1: resident
            pl.BlockSpec((1, HIDDEN), lambda i: (0, 0)),             # b1: resident
            pl.BlockSpec((1, HIDDEN), lambda i: (0, 0)),             # W2 row: resident
            pl.BlockSpec(memory_space=pltpu.MemorySpace.SMEM),       # b2 scalar
        ],
        out_specs=pl.BlockSpec((tb, OUT_FEATURES), lambda i: (i, 0)),
        compiler_params=pltpu.CompilerParams(
            dimension_semantics=("parallel",)),
        cost_estimate=cost,
    )(x_flat, w1_bf16, b1_row, w2_row, b2_s)

    return out[:B]


def init_params(key):
    """Deterministic synthetic parameters with the same shapes as the PyTorch
    module (Linear stores weight as (out, in); we keep the transposed (in, out)
    layout the kernel consumes)."""
    k1, k2, k3, k4 = jax.random.split(key, 4)
    bound1 = 1.0 / (IN_FEATURES ** 0.5)
    bound2 = 1.0 / (HIDDEN ** 0.5)
    w1 = jax.random.uniform(k1, (IN_FEATURES, HIDDEN), jnp.float32, -bound1, bound1)
    b1 = jax.random.uniform(k2, (1, HIDDEN), jnp.float32, -bound1, bound1)
    w2 = jax.random.uniform(k3, (HIDDEN, OUT_FEATURES), jnp.float32, -bound2, bound2)
    b2 = jax.random.uniform(k4, (1, OUT_FEATURES), jnp.float32, -bound2, bound2)
    return w1, b1, w2, b2


if __name__ == "__main__":
    key = jax.random.PRNGKey(0)
    kx, kp = jax.random.split(key)

    # Small batch of NCHW inputs consistent with in_features = 12*8*8.
    x = jax.random.normal(kx, (2, 12, 8, 8), dtype=jnp.float32)
    w1, b1, w2, b2 = init_params(kp)

    out = simple_ff(x, w1, b1, w2, b2)
    jax.block_until_ready(out)

    # Plain-JAX f32 reference check (tolerance loosened for the bf16 MXU matmul).
    x_flat = x.reshape(x.shape[0], -1)
    ref = jnp.tanh(jnp.maximum(x_flat @ w1 + b1, 0.0) @ w2 + b2)
    assert out.shape == (2, 1)
    assert jnp.allclose(out, ref, atol=2e-2, rtol=2e-2)

    print("KERNEL_OK")
</pallas_src>

<mosaic_0001>
module attributes {stable_mosaic.version = 11 : i64} {
  func.func @_simple_ff_kernel(%arg0: i32, %arg1: memref<128x768xf32, #tpu.memory_space<vmem>>, %arg2: memref<768x384xbf16, #tpu.memory_space<vmem>>, %arg3: memref<1x384xf32, #tpu.memory_space<vmem>>, %arg4: memref<1x384xf32, #tpu.memory_space<vmem>>, %arg5: memref<1x1xf32, #tpu.memory_space<smem>>, %arg6: memref<128x1xf32, #tpu.memory_space<vmem>>) attributes {dimension_semantics = [#tpu.dimension_semantics<parallel>], iteration_bounds = array<i64: 1>, scalar_prefetch = 0 : i64, scratch_operands = 0 : i64, tpu.core_type = #tpu.core_type<tc>, window_params = [{transform_indices = @transform_0, window_bounds = array<i64: 128, 768>}, {pipeline_mode = #tpu.pipeline_mode<synchronous>, transform_indices = @transform_1, window_bounds = array<i64: 768, 384>}, {pipeline_mode = #tpu.pipeline_mode<synchronous>, transform_indices = @transform_2, window_bounds = array<i64: 1, 384>}, {pipeline_mode = #tpu.pipeline_mode<synchronous>, transform_indices = @transform_3, window_bounds = array<i64: 1, 384>}, {transform_indices = @transform_4, window_bounds = array<i64: 1, 1>}, {transform_indices = @transform_5, window_bounds = array<i64: 128, 1>}]} {
    %c0 = arith.constant 0 : index
    %c0_0 = arith.constant 0 : index
    %0 = vector.load %arg1[%c0, %c0_0] : memref<128x768xf32, #tpu.memory_space<vmem>>, vector<128x768xf32>
    %1 = arith.truncf %0 : vector<128x768xf32> to vector<128x768xbf16>
    %c0_1 = arith.constant 0 : index
    %c0_2 = arith.constant 0 : index
    %2 = vector.load %arg2[%c0_1, %c0_2] : memref<768x384xbf16, #tpu.memory_space<vmem>>, vector<768x384xbf16>
    %cst = arith.constant dense<0.000000e+00> : vector<128x384xf32>
    %3 = tpu.matmul %1, %2, %cst {dimension_numbers = #tpu.dot_dimension_numbers<[1], [0], [0], [1], [0, 0, 1, 1], [], []>} : vector<128x768xbf16>, vector<768x384xbf16>, vector<128x384xf32> -> vector<128x384xf32>
    %c0_3 = arith.constant 0 : index
    %c0_4 = arith.constant 0 : index
    %4 = vector.load %arg3[%c0_3, %c0_4] : memref<1x384xf32, #tpu.memory_space<vmem>>, vector<1x384xf32>
    %5 = vector.broadcast %4 : vector<1x384xf32> to vector<128x384xf32>
    %6 = arith.addf %3, %5 : vector<128x384xf32>
    %cst_5 = arith.constant 0.000000e+00 : f32
    %7 = vector.broadcast %cst_5 : f32 to vector<128x384xf32>
    %8 = arith.maximumf %6, %7 : vector<128x384xf32>
    %c0_6 = arith.constant 0 : index
    %c0_7 = arith.constant 0 : index
    %9 = vector.load %arg4[%c0_6, %c0_7] : memref<1x384xf32, #tpu.memory_space<vmem>>, vector<1x384xf32>
    %10 = vector.broadcast %9 : vector<1x384xf32> to vector<128x384xf32>
    %11 = arith.mulf %8, %10 : vector<128x384xf32>
    %cst_8 = arith.constant dense<0.000000e+00> : vector<128xf32>
    %12 = vector.multi_reduction <add>, %11, %cst_8 [1] : vector<128x384xf32> to vector<128xf32>
    %13 = vector.shape_cast %12 : vector<128xf32> to vector<128x1xf32>
    %c0_9 = arith.constant 0 : index
    %c0_10 = arith.constant 0 : index
    %14 = memref.load %arg5[%c0_9, %c0_10] : memref<1x1xf32, #tpu.memory_space<smem>>
    %15 = vector.broadcast %14 : f32 to vector<128x1xf32>
    %16 = arith.addf %13, %15 : vector<128x1xf32>
    %17 = math.tanh %16 : vector<128x1xf32>
    %c0_11 = arith.constant 0 : index
    %c0_12 = arith.constant 0 : index
    %18 = vector.load %arg6[%c0_11, %c0_12] : memref<128x1xf32, #tpu.memory_space<vmem>>, vector<128x1xf32>
    tpu.vector_store %arg6[%c0_11, %c0_12], %17 {strides = array<i32>} : memref<128x1xf32, #tpu.memory_space<vmem>>, vector<128x1xf32>,
    return
  }
  func.func @transform_0(%arg0: i32) -> (i32, i32) {
    %c0_i32 = arith.constant 0 : i32
    %c0_i32_0 = arith.constant 0 : i32
    return %arg0, %c0_i32 : i32, i32
  }
  func.func @transform_1(%arg0: i32) -> (i32, i32) {
    %c0_i32 = arith.constant 0 : i32
    %c0_i32_0 = arith.constant 0 : i32
    %c0_i32_1 = arith.constant 0 : i32
    return %c0_i32, %c0_i32_0 : i32, i32
  }
  func.func @transform_2(%arg0: i32) -> (i32, i32) {
    %c0_i32 = arith.constant 0 : i32
    %c0_i32_0 = arith.constant 0 : i32
    %c0_i32_1 = arith.constant 0 : i32
    return %c0_i32, %c0_i32_0 : i32, i32
  }
  func.func @transform_3(%arg0: i32) -> (i32, i32) {
    %c0_i32 = arith.constant 0 : i32
    %c0_i32_0 = arith.constant 0 : i32
    %c0_i32_1 = arith.constant 0 : i32
    return %c0_i32, %c0_i32_0 : i32, i32
  }
  func.func @transform_4(%arg0: i32) -> (i32, i32) {
    %c0_i32 = arith.constant 0 : i32
    %c0_i32_0 = arith.constant 0 : i32
    %c0_i32_1 = arith.constant 0 : i32
    return %c0_i32, %c0_i32_0 : i32, i32
  }
  func.func @transform_5(%arg0: i32) -> (i32, i32) {
    %c0_i32 = arith.constant 0 : i32
    %c0_i32_0 = arith.constant 0 : i32
    return %arg0, %c0_i32 : i32, i32
  }
}

</mosaic_0001>

<llo_original>
// kernel: tpu_custom_call.1
$region0: #{tpu_custom_call.1}
  #allocation0 [shape = 'u32[]', space=smem, size = 0x4, offset = 0x4, fixed_abs, tag = 'smem constant byte address 0x4 - core index']
  #allocation1 [shape = 'u32[144,128]{1,0:T(1,128)}', space=vmem, size = 0x12000, scoped, tag = 'internal scratch']
  #allocation2 [shape = 'f32[1,1]{1,0:T(1,128)S(6)}', space=smem, size = 0x200, scoped, tag = 'scoped memory for tpu_custom_call.1']
  %s0 = inlined_call_operand.hbm [shape: f32[128,768], index: 0, kind: input, shape index: {}]
  %s1 = inlined_call_operand.hbm [shape: bf16[768,384], index: 1, kind: input, shape index: {}]
  %s2 = inlined_call_operand.vmem [shape: f32[1,384], index: 2, kind: input, shape index: {}]
  %s3 = inlined_call_operand.vmem [shape: f32[1,384], index: 3, kind: input, shape index: {}]
  %s4 = inlined_call_operand.<no memory space> [shape: f32[1,1], index: 4, kind: input, shape index: {}]
  %s5 = inlined_call_operand.vmem [shape: f32[128,1], index: 5, kind: output, shape index: {}]
  %s6 = sld [smem:[#allocation0]]
  $region38: #{tpu_custom_call.1} parent=0
    _
  %s8 = ssub.s32 1, %s6
  %s9 = scalar_select 0, %s8, %s6
  %10 = sst [smem:[#allocation2]] %s4
  $region1: #{tpu_custom_call.1} parent=0
    #allocation3 [shape = 'u8[393216]{0}', space=vmem, size = 0x60000, scoped, tag = 'input window, operand 0, single buffered']
    #allocation4 [shape = 's32[1]{0}', space=sflag, size = 0x4, scoped, tag = 'scoped memory for tpu_custom_call.1']
    #allocation5 [shape = 'u8[589824]{0}', space=vmem, size = 0x90000, scoped, tag = 'input window, operand 1, single buffered']
    #allocation6 [shape = 's32[1]{0}', space=sflag, size = 0x4, scoped, tag = 'scoped memory for tpu_custom_call.1']
    %11 = vsyncpa [#allocation4], 0
    %12 = vsyncpa [#allocation6], 0
    // Predicated region
    $region2: #{tpu_custom_call.1} parent=1 // pred_check
      _
    $region3: #{tpu_custom_call.1} parent=1 // pred_check_branch
      %14 = sbr.rel (0) target = $region5
    $region4: #{tpu_custom_call.1} parent=1 // pred_region
      %s16 = ssub.s32 12288, 12288
      %17 = vsyncadd [#allocation4], %s16
      %s18 = sshll.u32 [#allocation3], 4
      %s19 = int_to_ptr.vmem [resolvable:$true] %s18
      %24 = dma.hbm_to_vmem [thread:$0]  %s0, 12288, %s19, [#allocation4], 768, 768, 48
    $region5: #{tpu_custom_call.1} parent=1 // pred_fallthru
      _
    // Predicated region
    $region6: #{tpu_custom_call.1} parent=1 // pred_check
      _
    $region7: #{tpu_custom_call.1} parent=1 // pred_check_branch
      %26 = sbr.rel (0) target = $region9
    $region8: #{tpu_custom_call.1} parent=1 // pred_region
      %s28 = ssub.s32 18432, 18432
      %29 = vsyncadd [#allocation6], %s28
      %s30 = sshll.u32 [#allocation5], 4
      %s31 = int_to_ptr.vmem [resolvable:$true] %s30
      %36 = dma.hbm_to_vmem [thread:$0]  %s1, 18432, %s31, [#allocation6], 192, 192, 12
    $region9: #{tpu_custom_call.1} parent=1 // pred_fallthru
      _
    // Predicated region
    $region10: #{tpu_custom_call.1} parent=1 // pred_check
      _
    $region11: #{tpu_custom_call.1} parent=1 // pred_check_branch
      %38 = sbr.rel (0) target = $region13
    $region12: #{tpu_custom_call.1} parent=1 // pred_region
      _
    $region13: #{tpu_custom_call.1} parent=1 // pred_fallthru
      _
    // Predicated region
    $region14: #{tpu_custom_call.1} parent=1 // pred_check
      _
    $region15: #{tpu_custom_call.1} parent=1 // pred_check_branch
      %40 = sbr.rel (0) target = $region17
    $region16: #{tpu_custom_call.1} parent=1 // pred_region
      _
    $region17: #{tpu_custom_call.1} parent=1 // pred_fallthru
      _
    // Predicated region
    $region18: #{tpu_custom_call.1} parent=1 // pred_check
      _
    $region19: #{tpu_custom_call.1} parent=1 // pred_check_branch
      %42 = sbr.rel (0) target = $region21
    $region20: #{tpu_custom_call.1} parent=1 // pred_region
      _
    $region21: #{tpu_custom_call.1} parent=1 // pred_fallthru
      _
    // Predicated region
    $region22: #{tpu_custom_call.1} parent=1 // pred_check
      _
    $region23: #{tpu_custom_call.1} parent=1 // pred_check_branch
      %44 = sbr.rel (0) target = $region25
    $region24: #{tpu_custom_call.1} parent=1 // pred_region
      %45 = dma.done [#allocation4], 12288
    $region25: #{tpu_custom_call.1} parent=1 // pred_fallthru
      _
    // Predicated region
    $region26: #{tpu_custom_call.1} parent=1 // pred_check
      _
    $region27: #{tpu_custom_call.1} parent=1 // pred_check_branch
      %47 = sbr.rel (0) target = $region29
    $region28: #{tpu_custom_call.1} parent=1 // pred_region
      %48 = dma.done [#allocation6], 18432
    $region29: #{tpu_custom_call.1} parent=1 // pred_fallthru
      _
    %v50 = vld [vmem:[#allocation3] sm:$0xff]
    %v51 = vld [vmem:[#allocation3 + $0x8] sm:$0xff]
    %v52 = vld [vmem:[#allocation3 + $0x10] sm:$0xff]
    %v53 = vld [vmem:[#allocation3 + $0x18] sm:$0xff]
    %v54 = vld [vmem:[#allocation3 + $0x20] sm:$0xff]
    %v55 = vld [vmem:[#allocation3 + $0x28] sm:$0xff]
    %v56 = vld [vmem:[#allocation3 + $0x30] sm:$0xff]
    %v57 = vld [vmem:[#allocation3 + $0x38] sm:$0xff]
    %v58 = vld [vmem:[#allocation3 + $0x40] sm:$0xff]
    %v59 = vld [vmem:[#allocation3 + $0x48] sm:$0xff]
    %v60 = vld [vmem:[#allocation3 + $0x50] sm:$0xff]
    %v61 = vld [vmem:[#allocation3 + $0x58] sm:$0xff]
    %v62 = vld [vmem:[#allocation3 + $0x60] sm:$0xff]
    %v63 = vld [vmem:[#allocation3 + $0x68] sm:$0xff]
    %v64 = vld [vmem:[#allocation3 + $0x70] sm:$0xff]
    %v65 = vld [vmem:[#allocation3 + $0x78] sm:$0xff]
    %v66 = vld [vmem:[#allocation3 + $0x80] sm:$0xff]
    %v67 = vld [vmem:[#allocation3 + $0x88] sm:$0xff]
    %v68 = vld [vmem:[#allocation3 + $0x90] sm:$0xff]
    %v69 = vld [vmem:[#allocation3 + $0x98] sm:$0xff]
    %v70 = vld [vmem:[#allocation3 + $0xa0] sm:$0xff]
    %v71 = vld [vmem:[#allocation3 + $0xa8] sm:$0xff]
    %v72 = vld [vmem:[#allocation3 + $0xb0] sm:$0xff]
    %v73 = vld [vmem:[#allocation3 + $0xb8] sm:$0xff]
    %v74 = vld [vmem:[#allocation3 + $0xc0] sm:$0xff]
    %v75 = vld [vmem:[#allocation3 + $0xc8] sm:$0xff]
    %v76 = vld [vmem:[#allocation3 + $0xd0] sm:$0xff]
    %v77 = vld [vmem:[#allocation3 + $0xd8] sm:$0xff]
    %v78 = vld [vmem:[#allocation3 + $0xe0] sm:$0xff]
    %v79 = vld [vmem:[#allocation3 + $0xe8] sm:$0xff]
    %v80 = vld [vmem:[#allocation3 + $0xf0] sm:$0xff]
    %v81 = vld [vmem:[#allocation3 + $0xf8] sm:$0xff]
    %v82 = vld [vmem:[#allocation3 + $0x100] sm:$0xff]
    %v83 = vld [vmem:[#allocation3 + $0x108] sm:$0xff]
    %v84 = vld [vmem:[#allocation3 + $0x110] sm:$0xff]
    %v85 = vld [vmem:[#allocation3 + $0x118] sm:$0xff]
    %v86 = vld [vmem:[#allocation3 + $0x120] sm:$0xff]
    %v87 = vld [vmem:[#allocation3 + $0x128] sm:$0xff]
    %v88 = vld [vmem:[#allocation3 + $0x130] sm:$0xff]
    %v89 = vld [vmem:[#allocation3 + $0x138] sm:$0xff]
    %v90 = vld [vmem:[#allocation3 + $0x140] sm:$0xff]
    %v91 = vld [vmem:[#allocation3 + $0x148] sm:$0xff]
    %v92 = vld [vmem:[#allocation3 + $0x150] sm:$0xff]
    %v93 = vld [vmem:[#allocation3 + $0x158] sm:$0xff]
    %v94 = vld [vmem:[#allocation3 + $0x160] sm:$0xff]
    %v95 = vld [vmem:[#allocation3 + $0x168] sm:$0xff]
    %v96 = vld [vmem:[#allocation3 + $0x170] sm:$0xff]
    %v97 = vld [vmem:[#allocation3 + $0x178] sm:$0xff]
    %v98 = vld [vmem:[#allocation3 + $0x180] sm:$0xff]
    %v99 = vld [vmem:[#allocation3 + $0x188] sm:$0xff]
    %v100 = vld [vmem:[#allocation3 + $0x190] sm:$0xff]
    %v101 = vld [vmem:[#allocation3 + $0x198] sm:$0xff]
    %v102 = vld [vmem:[#allocation3 + $0x1a0] sm:$0xff]
    %v103 = vld [vmem:[#allocation3 + $0x1a8] sm:$0xff]
    %v104 = vld [vmem:[#allocation3 + $0x1b0] sm:$0xff]
    %v105 = vld [vmem:[#allocation3 + $0x1b8] sm:$0xff]
    %v106 = vld [vmem:[#allocation3 + $0x1c0] sm:$0xff]
    %v107 = vld [vmem:[#allocation3 + $0x1c8] sm:$0xff]
    %v108 = vld [vmem:[#allocation3 + $0x1d0] sm:$0xff]
    %v109 = vld [vmem:[#allocation3 + $0x1d8] sm:$0xff]
    %v110 = vld [vmem:[#allocation3 + $0x1e0] sm:$0xff]
    %v111 = vld [vmem:[#allocation3 + $0x1e8] sm:$0xff]
    %v112 = vld [vmem:[#allocation3 + $0x1f0] sm:$0xff]
    %v113 = vld [vmem:[#allocation3 + $0x1f8] sm:$0xff]
    %v114 = vld [vmem:[#allocation3 + $0x200] sm:$0xff]
    %v115 = vld [vmem:[#allocation3 + $0x208] sm:$0xff]
    %v116 = vld [vmem:[#allocation3 + $0x210] sm:$0xff]
    %v117 = vld [vmem:[#allocation3 + $0x218] sm:$0xff]
    %v118 = vld [vmem:[#allocation3 + $0x220] sm:$0xff]
    %v119 = vld [vmem:[#allocation3 + $0x228] sm:$0xff]
    %v120 = vld [vmem:[#allocation3 + $0x230] sm:$0xff]
    %v121 = vld [vmem:[#allocation3 + $0x238] sm:$0xff]
    %v122 = vld [vmem:[#allocation3 + $0x240] sm:$0xff]
    %v123 = vld [vmem:[#allocation3 + $0x248] sm:$0xff]
    %v124 = vld [vmem:[#allocation3 + $0x250] sm:$0xff]
    %v125 = vld [vmem:[#allocation3 + $0x258] sm:$0xff]
    %v126 = vld [vmem:[#allocation3 + $0x260] sm:$0xff]
    %v127 = vld [vmem:[#allocation3 + $0x268] sm:$0xff]
    %v128 = vld [vmem:[#allocation3 + $0x270] sm:$0xff]
    %v129 = vld [vmem:[#allocation3 + $0x278] sm:$0xff]
    %v130 = vld [vmem:[#allocation3 + $0x280] sm:$0xff]
    %v131 = vld [vmem:[#allocation3 + $0x288] sm:$0xff]
    %v132 = vld [vmem:[#allocation3 + $0x290] sm:$0xff]
    %v133 = vld [vmem:[#allocation3 + $0x298] sm:$0xff]
    %v134 = vld [vmem:[#allocation3 + $0x2a0] sm:$0xff]
    %v135 = vld [vmem:[#allocation3 + $0x2a8] sm:$0xff]
    %v136 = vld [vmem:[#allocation3 + $0x2b0] sm:$0xff]
    %v137 = vld [vmem:[#allocation3 + $0x2b8] sm:$0xff]
    %v138 = vld [vmem:[#allocation3 + $0x2c0] sm:$0xff]
    %v139 = vld [vmem:[#allocation3 + $0x2c8] sm:$0xff]
    %v140 = vld [vmem:[#allocation3 + $0x2d0] sm:$0xff]
    %v141 = vld [vmem:[#allocation3 + $0x2d8] sm:$0xff]
    %v142 = vld [vmem:[#allocation3 + $0x2e0] sm:$0xff]
    %v143 = vld [vmem:[#allocation3 + $0x2e8] sm:$0xff]
    %v144 = vld [vmem:[#allocation3 + $0x2f0] sm:$0xff]
    %v145 = vld [vmem:[#allocation3 + $0x2f8] sm:$0xff]
    %v146 = vpack.c.bf16 %v56, %v50
    %v147 = vpack.c.bf16 %v57, %v51
    %v148 = vpack.c.bf16 %v58, %v52
    %v149 = vpack.c.bf16 %v59, %v53
    %v150 = vpack.c.bf16 %v60, %v54
    %v151 = vpack.c.bf16 %v61, %v55
    %v152 = vpack.c.bf16 %v68, %v62
    %v153 = vpack.c.bf16 %v69, %v63
    %v154 = vpack.c.bf16 %v70, %v64
    %v155 = vpack.c.bf16 %v71, %v65
    %v156 = vpack.c.bf16 %v72, %v66
    %v157 = vpack.c.bf16 %v73, %v67
    %v158 = vpack.c.bf16 %v80, %v74
    %v159 = vpack.c.bf16 %v81, %v75
    %v160 = vpack.c.bf16 %v82, %v76
    %v161 = vpack.c.bf16 %v83, %v77
    %v162 = vpack.c.bf16 %v84, %v78
    %v163 = vpack.c.bf16 %v85, %v79
    %v164 = vpack.c.bf16 %v92, %v86
    %v165 = vpack.c.bf16 %v93, %v87
    %v166 = vpack.c.bf16 %v94, %v88
    %v167 = vpack.c.bf16 %v95, %v89
    %v168 = vpack.c.bf16 %v96, %v90
    %v169 = vpack.c.bf16 %v97, %v91
    %v170 = vpack.c.bf16 %v104, %v98
    %v171 = vpack.c.bf16 %v105, %v99
    %v172 = vpack.c.bf16 %v106, %v100
    %v173 = vpack.c.bf16 %v107, %v101
    %v174 = vpack.c.bf16 %v108, %v102
    %v175 = vpack.c.bf16 %v109, %v103
    %v176 = vpack.c.bf16 %v116, %v110
    %v177 = vpack.c.bf16 %v117, %v111
    %v178 = vpack.c.bf16 %v118, %v112
    %v179 = vpack.c.bf16 %v119, %v113
    %v180 = vpack.c.bf16 %v120, %v114
    %v181 = vpack.c.bf16 %v121, %v115
    %v182 = vpack.c.bf16 %v128, %v122
    %v183 = vpack.c.bf16 %v129, %v123
    %v184 = vpack.c.bf16 %v130, %v124
    %v185 = vpack.c.bf16 %v131, %v125
    %v186 = vpack.c.bf16 %v132, %v126
    %v187 = vpack.c.bf16 %v133, %v127
    %v188 = vpack.c.bf16 %v140, %v134
    %v189 = vpack.c.bf16 %v141, %v135
    %v190 = vpack.c.bf16 %v142, %v136
    %v191 = vpack.c.bf16 %v143, %v137
    %v192 = vpack.c.bf16 %v144, %v138
    %v193 = vpack.c.bf16 %v145, %v139
    %v194 = vld [vmem:[#allocation5] sm:$0xff]
    %v195 = vld [vmem:[#allocation5 + $0x8] sm:$0xf]
    %v196 = vld [vmem:[#allocation5 + $0xc] sm:$0xff]
    %v197 = vld [vmem:[#allocation5 + $0x14] sm:$0xf]
    %v198 = vld [vmem:[#allocation5 + $0x18] sm:$0xff]
    %v199 = vld [vmem:[#allocation5 + $0x20] sm:$0xf]
    %v200 = vld [vmem:[#allocation5 + $0x24] sm:$0xff]
    %v201 = vld [vmem:[#allocation5 + $0x2c] sm:$0xf]
    %v202 = vld [vmem:[#allocation5 + $0x30] sm:$0xff]
    %v203 = vld [vmem:[#allocation5 + $0x38] sm:$0xf]
    %v204 = vld [vmem:[#allocation5 + $0x3c] sm:$0xff]
    %v205 = vld [vmem:[#allocation5 + $0x44] sm:$0xf]
    %v206 = vld [vmem:[#allocation5 + $0x48] sm:$0xff]
    %v207 = vld [vmem:[#allocation5 + $0x50] sm:$0xf]
    %v208 = vld [vmem:[#allocation5 + $0x54] sm:$0xff]
    %v209 = vld [vmem:[#allocation5 + $0x5c] sm:$0xf]
    %v210 = vld [vmem:[#allocation5 + $0x60] sm:$0xff]
    %v211 = vld [vmem:[#allocation5 + $0x68] sm:$0xf]
    %v212 = vld [vmem:[#allocation5 + $0x6c] sm:$0xff]
    %v213 = vld [vmem:[#allocation5 + $0x74] sm:$0xf]
    %v214 = vld [vmem:[#allocation5 + $0x78] sm:$0xff]
    %v215 = vld [vmem:[#allocation5 + $0x80] sm:$0xf]
    %v216 = vld [vmem:[#allocation5 + $0x84] sm:$0xff]
    %v217 = vld [vmem:[#allocation5 + $0x8c] sm:$0xf]
    %v218 = vld [vmem:[#allocation5 + $0x90] sm:$0xff]
    %v219 = vld [vmem:[#allocation5 + $0x98] sm:$0xf]
    %v220 = vld [vmem:[#allocation5 + $0x9c] sm:$0xff]
    %v221 = vld [vmem:[#allocation5 + $0xa4] sm:$0xf]
    %v222 = vld [vmem:[#allocation5 + $0xa8] sm:$0xff]
    %v223 = vld [vmem:[#allocation5 + $0xb0] sm:$0xf]
    %v224 = vld [vmem:[#allocation5 + $0xb4] sm:$0xff]
    %v225 = vld [vmem:[#allocation5 + $0xbc] sm:$0xf]
    %v226 = vld [vmem:[#allocation5 + $0xc0] sm:$0xff]
    %v227 = vld [vmem:[#allocation5 + $0xc8] sm:$0xf]
    %v228 = vld [vmem:[#allocation5 + $0xcc] sm:$0xff]
    %v229 = vld [vmem:[#allocation5 + $0xd4] sm:$0xf]
    %v230 = vld [vmem:[#allocation5 + $0xd8] sm:$0xff]
    %v231 = vld [vmem:[#allocation5 + $0xe0] sm:$0xf]
    %v232 = vld [vmem:[#allocation5 + $0xe4] sm:$0xff]
    %v233 = vld [vmem:[#allocation5 + $0xec] sm:$0xf]
    %v234 = vld [vmem:[#allocation5 + $0xf0] sm:$0xff]
    %v235 = vld [vmem:[#allocation5 + $0xf8] sm:$0xf]
    %v236 = vld [vmem:[#allocation5 + $0xfc] sm:$0xff]
    %v237 = vld [vmem:[#allocation5 + $0x104] sm:$0xf]
    %v238 = vld [vmem:[#allocation5 + $0x108] sm:$0xff]
    %v239 = vld [vmem:[#allocation5 + $0x110] sm:$0xf]
    %v240 = vld [vmem:[#allocation5 + $0x114] sm:$0xff]
    %v241 = vld [vmem:[#allocation5 + $0x11c] sm:$0xf]
    %v242 = vld [vmem:[#allocation5 + $0x120] sm:$0xff]
    %v243 = vld [vmem:[#allocation5 + $0x128] sm:$0xf]
    %v244 = vld [vmem:[#allocation5 + $0x12c] sm:$0xff]
    %v245 = vld [vmem:[#allocation5 + $0x134] sm:$0xf]
    %v246 = vld [vmem:[#allocation5 + $0x138] sm:$0xff]
    %v247 = vld [vmem:[#allocation5 + $0x140] sm:$0xf]
    %v248 = vld [vmem:[#allocation5 + $0x144] sm:$0xff]
    %v249 = vld [vmem:[#allocation5 + $0x14c] sm:$0xf]
    %v250 = vld [vmem:[#allocation5 + $0x150] sm:$0xff]
    %v251 = vld [vmem:[#allocation5 + $0x158] sm:$0xf]
    %v252 = vld [vmem:[#allocation5 + $0x15c] sm:$0xff]
    %v253 = vld [vmem:[#allocation5 + $0x164] sm:$0xf]
    %v254 = vld [vmem:[#allocation5 + $0x168] sm:$0xff]
    %v255 = vld [vmem:[#allocation5 + $0x170] sm:$0xf]
    %v256 = vld [vmem:[#allocation5 + $0x174] sm:$0xff]
    %v257 = vld [vmem:[#allocation5 + $0x17c] sm:$0xf]
    %v258 = vld [vmem:[#allocation5 + $0x180] sm:$0xff]
    %v259 = vld [vmem:[#allocation5 + $0x188] sm:$0xf]
    %v260 = vld [vmem:[#allocation5 + $0x18c] sm:$0xff]
    %v261 = vld [vmem:[#allocation5 + $0x194] sm:$0xf]
    %v262 = vld [vmem:[#allocation5 + $0x198] sm:$0xff]
    %v263 = vld [vmem:[#allocation5 + $0x1a0] sm:$0xf]
    %v264 = vld [vmem:[#allocation5 + $0x1a4] sm:$0xff]
    %v265 = vld [vmem:[#allocation5 + $0x1ac] sm:$0xf]
    %v266 = vld [vmem:[#allocation5 + $0x1b0] sm:$0xff]
    %v267 = vld [vmem:[#allocation5 + $0x1b8] sm:$0xf]
    %v268 = vld [vmem:[#allocation5 + $0x1bc] sm:$0xff]
    %v269 = vld [vmem:[#allocation5 + $0x1c4] sm:$0xf]
    %v270 = vld [vmem:[#allocation5 + $0x1c8] sm:$0xff]
    %v271 = vld [vmem:[#allocation5 + $0x1d0] sm:$0xf]
    %v272 = vld [vmem:[#allocation5 + $0x1d4] sm:$0xff]
    %v273 = vld [vmem:[#allocation5 + $0x1dc] sm:$0xf]
    %v274 = vld [vmem:[#allocation5 + $0x1e0] sm:$0xff]
    %v275 = vld [vmem:[#allocation5 + $0x1e8] sm:$0xf]
    %v276 = vld [vmem:[#allocation5 + $0x1ec] sm:$0xff]
    %v277 = vld [vmem:[#allocation5 + $0x1f4] sm:$0xf]
    %v278 = vld [vmem:[#allocation5 + $0x1f8] sm:$0xff]
    %v279 = vld [vmem:[#allocation5 + $0x200] sm:$0xf]
    %v280 = vld [vmem:[#allocation5 + $0x204] sm:$0xff]
    %v281 = vld [vmem:[#allocation5 + $0x20c] sm:$0xf]
    %v282 = vld [vmem:[#allocation5 + $0x210] sm:$0xff]
    %v283 = vld [vmem:[#allocation5 + $0x218] sm:$0xf]
    %v284 = vld [vmem:[#allocation5 + $0x21c] sm:$0xff]
    %v285 = vld [vmem:[#allocation5 + $0x224] sm:$0xf]
    %v286 = vld [vmem:[#allocation5 + $0x228] sm:$0xff]
    %v287 = vld [vmem:[#allocation5 + $0x230] sm:$0xf]
    %v288 = vld [vmem:[#allocation5 + $0x234] sm:$0xff]
    %v289 = vld [vmem:[#allocation5 + $0x23c] sm:$0xf]
    %v290 = vld [vmem:[#allocation5 + $0x240] sm:$0xff]
    %v291 = vld [vmem:[#allocation5 + $0x248] sm:$0xf]
    %v292 = vld [vmem:[#allocation5 + $0x24c] sm:$0xff]
    %v293 = vld [vmem:[#allocation5 + $0x254] sm:$0xf]
    %v294 = vld [vmem:[#allocation5 + $0x258] sm:$0xff]
    %v295 = vld [vmem:[#allocation5 + $0x260] sm:$0xf]
    %v296 = vld [vmem:[#allocation5 + $0x264] sm:$0xff]
    %v297 = vld [vmem:[#allocation5 + $0x26c] sm:$0xf]
    %v298 = vld [vmem:[#allocation5 + $0x270] sm:$0xff]
    %v299 = vld [vmem:[#allocation5 + $0x278] sm:$0xf]
    %v300 = vld [vmem:[#allocation5 + $0x27c] sm:$0xff]
    %v301 = vld [vmem:[#allocation5 + $0x284] sm:$0xf]
    %v302 = vld [vmem:[#allocation5 + $0x288] sm:$0xff]
    %v303 = vld [vmem:[#allocation5 + $0x290] sm:$0xf]
    %v304 = vld [vmem:[#allocation5 + $0x294] sm:$0xff]
    %v305 = vld [vmem:[#allocation5 + $0x29c] sm:$0xf]
    %v306 = vld [vmem:[#allocation5 + $0x2a0] sm:$0xff]
    %v307 = vld [vmem:[#allocation5 + $0x2a8] sm:$0xf]
    %v308 = vld [vmem:[#allocation5 + $0x2ac] sm:$0xff]
    %v309 = vld [vmem:[#allocation5 + $0x2b4] sm:$0xf]
    %v310 = vld [vmem:[#allocation5 + $0x2b8] sm:$0xff]
    %v311 = vld [vmem:[#allocation5 + $0x2c0] sm:$0xf]
    %v312 = vld [vmem:[#allocation5 + $0x2c4] sm:$0xff]
    %v313 = vld [vmem:[#allocation5 + $0x2cc] sm:$0xf]
    %v314 = vld [vmem:[#allocation5 + $0x2d0] sm:$0xff]
    %v315 = vld [vmem:[#allocation5 + $0x2d8] sm:$0xf]
    %v316 = vld [vmem:[#allocation5 + $0x2dc] sm:$0xff]
    %v317 = vld [vmem:[#allocation5 + $0x2e4] sm:$0xf]
    %v318 = vld [vmem:[#allocation5 + $0x2e8] sm:$0xff]
    %v319 = vld [vmem:[#allocation5 + $0x2f0] sm:$0xf]
    %v320 = vld [vmem:[#allocation5 + $0x2f4] sm:$0xff]
    %v321 = vld [vmem:[#allocation5 + $0x2fc] sm:$0xf]
    %v322 = vld [vmem:[#allocation5 + $0x300] sm:$0xff]
    %v323 = vld [vmem:[#allocation5 + $0x308] sm:$0xf]
    %v324 = vld [vmem:[#allocation5 + $0x30c] sm:$0xff]
    %v325 = vld [vmem:[#allocation5 + $0x314] sm:$0xf]
    %v326 = vld [vmem:[#allocation5 + $0x318] sm:$0xff]
    %v327 = vld [vmem:[#allocation5 + $0x320] sm:$0xf]
    %v328 = vld [vmem:[#allocation5 + $0x324] sm:$0xff]
    %v329 = vld [vmem:[#allocation5 + $0x32c] sm:$0xf]
    %v330 = vld [vmem:[#allocation5 + $0x330] sm:$0xff]
    %v331 = vld [vmem:[#allocation5 + $0x338] sm:$0xf]
    %v332 = vld [vmem:[#allocation5 + $0x33c] sm:$0xff]
    %v333 = vld [vmem:[#allocation5 + $0x344] sm:$0xf]
    %v334 = vld [vmem:[#allocation5 + $0x348] sm:$0xff]
    %v335 = vld [vmem:[#allocation5 + $0x350] sm:$0xf]
    %v336 = vld [vmem:[#allocation5 + $0x354] sm:$0xff]
    %v337 = vld [vmem:[#allocation5 + $0x35c] sm:$0xf]
    %v338 = vld [vmem:[#allocation5 + $0x360] sm:$0xff]
    %v339 = vld [vmem:[#allocation5 + $0x368] sm:$0xf]
    %v340 = vld [vmem:[#allocation5 + $0x36c] sm:$0xff]
    %v341 = vld [vmem:[#allocation5 + $0x374] sm:$0xf]
    %v342 = vld [vmem:[#allocation5 + $0x378] sm:$0xff]
    %v343 = vld [vmem:[#allocation5 + $0x380] sm:$0xf]
    %v344 = vld [vmem:[#allocation5 + $0x384] sm:$0xff]
    %v345 = vld [vmem:[#allocation5 + $0x38c] sm:$0xf]
    %v346 = vld [vmem:[#allocation5 + $0x390] sm:$0xff]
    %v347 = vld [vmem:[#allocation5 + $0x398] sm:$0xf]
    %v348 = vld [vmem:[#allocation5 + $0x39c] sm:$0xff]
    %v349 = vld [vmem:[#allocation5 + $0x3a4] sm:$0xf]
    %v350 = vld [vmem:[#allocation5 + $0x3a8] sm:$0xff]
    %v351 = vld [vmem:[#allocation5 + $0x3b0] sm:$0xf]
    %v352 = vld [vmem:[#allocation5 + $0x3b4] sm:$0xff]
    %v353 = vld [vmem:[#allocation5 + $0x3bc] sm:$0xf]
    %v354 = vld [vmem:[#allocation5 + $0x3c0] sm:$0xff]
    %v355 = vld [vmem:[#allocation5 + $0x3c8] sm:$0xf]
    %v356 = vld [vmem:[#allocation5 + $0x3cc] sm:$0xff]
    %v357 = vld [vmem:[#allocation5 + $0x3d4] sm:$0xf]
    %v358 = vld [vmem:[#allocation5 + $0x3d8] sm:$0xff]
    %v359 = vld [vmem:[#allocation5 + $0x3e0] sm:$0xf]
    %v360 = vld [vmem:[#allocation5 + $0x3e4] sm:$0xff]
    %v361 = vld [vmem:[#allocation5 + $0x3ec] sm:$0xf]
    %v362 = vld [vmem:[#allocation5 + $0x3f0] sm:$0xff]
    %v363 = vld [vmem:[#allocation5 + $0x3f8] sm:$0xf]
    %v364 = vld [vmem:[#allocation5 + $0x3fc] sm:$0xff]
    %v365 = vld [vmem:[#allocation5 + $0x404] sm:$0xf]
    %v366 = vld [vmem:[#allocation5 + $0x408] sm:$0xff]
    %v367 = vld [vmem:[#allocation5 + $0x410] sm:$0xf]
    %v368 = vld [vmem:[#allocation5 + $0x414] sm:$0xff]
    %v369 = vld [vmem:[#allocation5 + $0x41c] sm:$0xf]
    %v370 = vld [vmem:[#allocation5 + $0x420] sm:$0xff]
    %v371 = vld [vmem:[#allocation5 + $0x428] sm:$0xf]
    %v372 = vld [vmem:[#allocation5 + $0x42c] sm:$0xff]
    %v373 = vld [vmem:[#allocation5 + $0x434] sm:$0xf]
    %v374 = vld [vmem:[#allocation5 + $0x438] sm:$0xff]
    %v375 = vld [vmem:[#allocation5 + $0x440] sm:$0xf]
    %v376 = vld [vmem:[#allocation5 + $0x444] sm:$0xff]
    %v377 = vld [vmem:[#allocation5 + $0x44c] sm:$0xf]
    %v378 = vld [vmem:[#allocation5 + $0x450] sm:$0xff]
    %v379 = vld [vmem:[#allocation5 + $0x458] sm:$0xf]
    %v380 = vld [vmem:[#allocation5 + $0x45c] sm:$0xff]
    %v381 = vld [vmem:[#allocation5 + $0x464] sm:$0xf]
    %v382 = vld [vmem:[#allocation5 + $0x468] sm:$0xff]
    %v383 = vld [vmem:[#allocation5 + $0x470] sm:$0xf]
    %v384 = vld [vmem:[#allocation5 + $0x474] sm:$0xff]
    %v385 = vld [vmem:[#allocation5 + $0x47c] sm:$0xf]
    %v386 = vld [vmem:[%s2] sm:$0x7]
    %v388 = vlaneseq
    %v389 = vshrl.u32 %v388, 7
    %v390 = vsub.s32 0, %v389
    %v391 = vrot.slane %v386, %v390
    %v392 = vlaneseq
    %v393 = vshrl.u32 %v392, 7
    %v394 = vsub.s32 1, %v393
    %v395 = vrot.slane %v386, %v394
    %v396 = vlaneseq
    %v397 = vshrl.u32 %v396, 7
    %v398 = vsub.s32 2, %v397
    %v399 = vrot.slane %v386, %v398
    %v595 = vunpack.c.l.b16 %v194
    %v596 = vunpack.c.h.b16 %v194
    %v597 = vunpack.c.l.b16 %v195
    %v598 = vunpack.c.l.b16 %v196
    %v599 = vunpack.c.h.b16 %v196
    %v600 = vunpack.c.l.b16 %v197
    %v601 = vunpack.c.l.b16 %v198
    %v602 = vunpack.c.h.b16 %v198
    %v603 = vunpack.c.l.b16 %v199
    %v604 = vunpack.c.l.b16 %v200
    %v605 = vunpack.c.h.b16 %v200
    %v606 = vunpack.c.l.b16 %v201
    %v607 = vunpack.c.l.b16 %v202
    %v608 = vunpack.c.h.b16 %v202
    %v609 = vunpack.c.l.b16 %v203
    %v610 = vunpack.c.l.b16 %v204
    %v611 = vunpack.c.h.b16 %v204
    %v612 = vunpack.c.l.b16 %v205
    %v613 = vunpack.c.l.b16 %v206
    %v614 = vunpack.c.h.b16 %v206
    %v615 = vunpack.c.l.b16 %v207
    %v616 = vunpack.c.l.b16 %v208
    %v617 = vunpack.c.h.b16 %v208
    %v618 = vunpack.c.l.b16 %v209
    %v619 = vunpack.c.l.b16 %v210
    %v620 = vunpack.c.h.b16 %v210
    %v621 = vunpack.c.l.b16 %v211
    %v622 = vunpack.c.l.b16 %v212
    %v623 = vunpack.c.h.b16 %v212
    %v624 = vunpack.c.l.b16 %v213
    %v625 = vunpack.c.l.b16 %v214
    %v626 = vunpack.c.h.b16 %v214
    %v627 = vunpack.c.l.b16 %v215
    %v628 = vunpack.c.l.b16 %v216
    %v629 = vunpack.c.h.b16 %v216
    %v630 = vunpack.c.l.b16 %v217
    %v631 = vunpack.c.l.b16 %v218
    %v632 = vunpack.c.h.b16 %v218
    %v633 = vunpack.c.l.b16 %v219
    %v634 = vunpack.c.l.b16 %v220
    %v635 = vunpack.c.h.b16 %v220
    %v636 = vunpack.c.l.b16 %v221
    %v637 = vunpack.c.l.b16 %v222
    %v638 = vunpack.c.h.b16 %v222
    %v639 = vunpack.c.l.b16 %v223
    %v640 = vunpack.c.l.b16 %v224
    %v641 = vunpack.c.h.b16 %v224
    %v642 = vunpack.c.l.b16 %v225
    %v643 = vunpack.c.l.b16 %v226
    %v644 = vunpack.c.h.b16 %v226
    %v645 = vunpack.c.l.b16 %v227
    %v646 = vunpack.c.l.b16 %v228
    %v647 = vunpack.c.h.b16 %v228
    %v648 = vunpack.c.l.b16 %v229
    %v649 = vunpack.c.l.b16 %v230
    %v650 = vunpack.c.h.b16 %v230
    %v651 = vunpack.c.l.b16 %v231
    %v652 = vunpack.c.l.b16 %v232
    %v653 = vunpack.c.h.b16 %v232
    %v654 = vunpack.c.l.b16 %v233
    %v655 = vunpack.c.l.b16 %v234
    %v656 = vunpack.c.h.b16 %v234
    %v657 = vunpack.c.l.b16 %v235
    %v658 = vunpack.c.l.b16 %v236
    %v659 = vunpack.c.h.b16 %v236
    %v660 = vunpack.c.l.b16 %v237
    %v661 = vunpack.c.l.b16 %v238
    %v662 = vunpack.c.h.b16 %v238
    %v663 = vunpack.c.l.b16 %v239
    %v664 = vunpack.c.l.b16 %v240
    %v665 = vunpack.c.h.b16 %v240
    %v666 = vunpack.c.l.b16 %v241
    %v667 = vunpack.c.l.b16 %v242
    %v668 = vunpack.c.h.b16 %v242
    %v669 = vunpack.c.l.b16 %v243
    %v670 = vunpack.c.l.b16 %v244
    %v671 = vunpack.c.h.b16 %v244
    %v672 = vunpack.c.l.b16 %v245
    %v673 = vunpack.c.l.b16 %v246
    %v674 = vunpack.c.h.b16 %v246
    %v675 = vunpack.c.l.b16 %v247
    %v676 = vunpack.c.l.b16 %v248
    %v677 = vunpack.c.h.b16 %v248
    %v678 = vunpack.c.l.b16 %v249
    %v679 = vunpack.c.l.b16 %v250
    %v680 = vunpack.c.h.b16 %v250
    %v681 = vunpack.c.l.b16 %v251
    %v682 = vunpack.c.l.b16 %v252
    %v683 = vunpack.c.h.b16 %v252
    %v684 = vunpack.c.l.b16 %v253
    %v685 = vunpack.c.l.b16 %v254
    %v686 = vunpack.c.h.b16 %v254
    %v687 = vunpack.c.l.b16 %v255
    %v688 = vunpack.c.l.b16 %v256
    %v689 = vunpack.c.h.b16 %v256
    %v690 = vunpack.c.l.b16 %v257
    %v691 = vunpack.c.l.b16 %v258
    %v692 = vunpack.c.h.b16 %v258
    %v693 = vunpack.c.l.b16 %v259
    %v694 = vunpack.c.l.b16 %v260
    %v695 = vunpack.c.h.b16 %v260
    %v696 = vunpack.c.l.b16 %v261
    %v697 = vunpack.c.l.b16 %v262
    %v698 = vunpack.c.h.b16 %v262
    %v699 = vunpack.c.l.b16 %v263
    %v700 = vunpack.c.l.b16 %v264
    %v701 = vunpack.c.h.b16 %v264
    %v702 = vunpack.c.l.b16 %v265
    %v703 = vunpack.c.l.b16 %v266
    %v704 = vunpack.c.h.b16 %v266
    %v705 = vunpack.c.l.b16 %v267
    %v706 = vunpack.c.l.b16 %v268
    %v707 = vunpack.c.h.b16 %v268
    %v708 = vunpack.c.l.b16 %v269
    %v709 = vunpack.c.l.b16 %v270
    %v710 = vunpack.c.h.b16 %v270
    %v711 = vunpack.c.l.b16 %v271
    %v712 = vunpack.c.l.b16 %v272
    %v713 = vunpack.c.h.b16 %v272
    %v714 = vunpack.c.l.b16 %v273
    %v715 = vunpack.c.l.b16 %v274
    %v716 = vunpack.c.h.b16 %v274
    %v717 = vunpack.c.l.b16 %v275
    %v718 = vunpack.c.l.b16 %v276
    %v719 = vunpack.c.h.b16 %v276
    %v720 = vunpack.c.l.b16 %v277
    %v721 = vunpack.c.l.b16 %v278
    %v722 = vunpack.c.h.b16 %v278
    %v723 = vunpack.c.l.b16 %v279
    %v724 = vunpack.c.l.b16 %v280
    %v725 = vunpack.c.h.b16 %v280
    %v726 = vunpack.c.l.b16 %v281
    %v727 = vunpack.c.l.b16 %v282
    %v728 = vunpack.c.h.b16 %v282
    %v729 = vunpack.c.l.b16 %v283
    %v730 = vunpack.c.l.b16 %v284
    %v731 = vunpack.c.h.b16 %v284
    %v732 = vunpack.c.l.b16 %v285
    %v733 = vunpack.c.l.b16 %v286
    %v734 = vunpack.c.h.b16 %v286
    %v735 = vunpack.c.l.b16 %v287
    %v736 = vunpack.c.l.b16 %v288
    %v737 = vunpack.c.h.b16 %v288
    %v738 = vunpack.c.l.b16 %v289
    %v739 = vunpack.c.l.b16 %v290
    %v740 = vunpack.c.h.b16 %v290
    %v741 = vunpack.c.l.b16 %v291
    %v742 = vunpack.c.l.b16 %v292
    %v743 = vunpack.c.h.b16 %v292
    %v744 = vunpack.c.l.b16 %v293
    %v745 = vunpack.c.l.b16 %v294
    %v746 = vunpack.c.h.b16 %v294
    %v747 = vunpack.c.l.b16 %v295
    %v748 = vunpack.c.l.b16 %v296
    %v749 = vunpack.c.h.b16 %v296
    %v750 = vunpack.c.l.b16 %v297
    %v751 = vunpack.c.l.b16 %v298
    %v752 = vunpack.c.h.b16 %v298
    %v753 = vunpack.c.l.b16 %v299
    %v754 = vunpack.c.l.b16 %v300
    %v755 = vunpack.c.h.b16 %v300
    %v756 = vunpack.c.l.b16 %v301
    %v757 = vunpack.c.l.b16 %v302
    %v758 = vunpack.c.h.b16 %v302
    %v759 = vunpack.c.l.b16 %v303
    %v760 = vunpack.c.l.b16 %v304
    %v761 = vunpack.c.h.b16 %v304
    %v762 = vunpack.c.l.b16 %v305
    %v763 = vunpack.c.l.b16 %v306
    %v764 = vunpack.c.h.b16 %v306
    %v765 = vunpack.c.l.b16 %v307
    %v766 = vunpack.c.l.b16 %v308
    %v767 = vunpack.c.h.b16 %v308
    %v768 = vunpack.c.l.b16 %v309
    %v769 = vunpack.c.l.b16 %v310
    %v770 = vunpack.c.h.b16 %v310
    %v771 = vunpack.c.l.b16 %v311
    %v772 = vunpack.c.l.b16 %v312
    %v773 = vunpack.c.h.b16 %v312
    %v774 = vunpack.c.l.b16 %v313
    %v775 = vunpack.c.l.b16 %v314
    %v776 = vunpack.c.h.b16 %v314
    %v777 = vunpack.c.l.b16 %v315
    %v778 = vunpack.c.l.b16 %v316
    %v779 = vunpack.c.h.b16 %v316
    %v780 = vunpack.c.l.b16 %v317
    %v781 = vunpack.c.l.b16 %v318
    %v782 = vunpack.c.h.b16 %v318
    %v783 = vunpack.c.l.b16 %v319
    %v784 = vunpack.c.l.b16 %v320
    %v785 = vunpack.c.h.b16 %v320
    %v786 = vunpack.c.l.b16 %v321
    %v787 = vunpack.c.l.b16 %v322
    %v788 = vunpack.c.h.b16 %v322
    %v789 = vunpack.c.l.b16 %v323
    %v790 = vunpack.c.l.b16 %v324
    %v791 = vunpack.c.h.b16 %v324
    %v792 = vunpack.c.l.b16 %v325
    %v793 = vunpack.c.l.b16 %v326
    %v794 = vunpack.c.h.b16 %v326
    %v795 = vunpack.c.l.b16 %v327
    %v796 = vunpack.c.l.b16 %v328
    %v797 = vunpack.c.h.b16 %v328
    %v798 = vunpack.c.l.b16 %v329
    %v799 = vunpack.c.l.b16 %v330
    %v800 = vunpack.c.h.b16 %v330
    %v801 = vunpack.c.l.b16 %v331
    %v802 = vunpack.c.l.b16 %v332
    %v803 = vunpack.c.h.b16 %v332
    %v804 = vunpack.c.l.b16 %v333
    %v805 = vunpack.c.l.b16 %v334
    %v806 = vunpack.c.h.b16 %v334
    %v807 = vunpack.c.l.b16 %v335
    %v808 = vunpack.c.l.b16 %v336
    %v809 = vunpack.c.h.b16 %v336
    %v810 = vunpack.c.l.b16 %v337
    %v811 = vunpack.c.l.b16 %v338
    %v812 = vunpack.c.h.b16 %v338
    %v813 = vunpack.c.l.b16 %v339
    %v814 = vunpack.c.l.b16 %v340
    %v815 = vunpack.c.h.b16 %v340
    %v816 = vunpack.c.l.b16 %v341
    %v817 = vunpack.c.l.b16 %v342
    %v818 = vunpack.c.h.b16 %v342
    %v819 = vunpack.c.l.b16 %v343
    %v820 = vunpack.c.l.b16 %v344
    %v821 = vunpack.c.h.b16 %v344
    %v822 = vunpack.c.l.b16 %v345
    %v823 = vunpack.c.l.b16 %v346
    %v824 = vunpack.c.h.b16 %v346
    %v825 = vunpack.c.l.b16 %v347
    %v826 = vunpack.c.l.b16 %v348
    %v827 = vunpack.c.h.b16 %v348
    %v828 = vunpack.c.l.b16 %v349
    %v829 = vunpack.c.l.b16 %v350
    %v830 = vunpack.c.h.b16 %v350
    %v831 = vunpack.c.l.b16 %v351
    %v832 = vunpack.c.l.b16 %v352
    %v833 = vunpack.c.h.b16 %v352
    %v834 = vunpack.c.l.b16 %v353
    %v835 = vunpack.c.l.b16 %v354
    %v836 = vunpack.c.h.b16 %v354
    %v837 = vunpack.c.l.b16 %v355
    %v838 = vunpack.c.l.b16 %v356
    %v839 = vunpack.c.h.b16 %v356
    %v840 = vunpack.c.l.b16 %v357
    %v841 = vunpack.c.l.b16 %v358
    %v842 = vunpack.c.h.b16 %v358
    %v843 = vunpack.c.l.b16 %v359
    %v844 = vunpack.c.l.b16 %v360
    %v845 = vunpack.c.h.b16 %v360
    %v846 = vunpack.c.l.b16 %v361
    %v847 = vunpack.c.l.b16 %v362
    %v848 = vunpack.c.h.b16 %v362
    %v849 = vunpack.c.l.b16 %v363
    %v850 = vunpack.c.l.b16 %v364
    %v851 = vunpack.c.h.b16 %v364
    %v852 = vunpack.c.l.b16 %v365
    %v853 = vunpack.c.l.b16 %v366
    %v854 = vunpack.c.h.b16 %v366
    %v855 = vunpack.c.l.b16 %v367
    %v856 = vunpack.c.l.b16 %v368
    %v857 = vunpack.c.h.b16 %v368
    %v858 = vunpack.c.l.b16 %v369
    %v859 = vunpack.c.l.b16 %v370
    %v860 = vunpack.c.h.b16 %v370
    %v861 = vunpack.c.l.b16 %v371
    %v862 = vunpack.c.l.b16 %v372
    %v863 = vunpack.c.h.b16 %v372
    %v864 = vunpack.c.l.b16 %v373
    %v865 = vunpack.c.l.b16 %v374
    %v866 = vunpack.c.h.b16 %v374
    %v867 = vunpack.c.l.b16 %v375
    %v868 = vunpack.c.l.b16 %v376
    %v869 = vunpack.c.h.b16 %v376
    %v870 = vunpack.c.l.b16 %v377
    %v871 = vunpack.c.l.b16 %v378
    %v872 = vunpack.c.h.b16 %v378
    %v873 = vunpack.c.l.b16 %v379
    %v874 = vunpack.c.l.b16 %v380
    %v875 = vunpack.c.h.b16 %v380
    %v876 = vunpack.c.l.b16 %v381
    %v877 = vunpack.c.l.b16 %v382
    %v878 = vunpack.c.h.b16 %v382
    %v879 = vunpack.c.l.b16 %v383
    %v880 = vunpack.c.l.b16 %v384
    %v881 = vunpack.c.h.b16 %v384
    %v882 = vunpack.c.l.b16 %v385
    %v883 = vpack.c.b16 %v598, %v595
    %v884 = vpack.c.b16 %v599, %v596
    %v885 = vpack.c.b16 %v600, %v597
    %v886 = vpack.c.b16 %v604, %v601
    %v887 = vpack.c.b16 %v605, %v602
    %v888 = vpack.c.b16 %v606, %v603
    %v889 = vpack.c.b16 %v610, %v607
    %v890 = vpack.c.b16 %v611, %v608
    %v891 = vpack.c.b16 %v612, %v609
    %v892 = vpack.c.b16 %v616, %v613
    %v893 = vpack.c.b16 %v617, %v614
    %v894 = vpack.c.b16 %v618, %v615
    %v895 = vpack.c.b16 %v622, %v619
    %v896 = vpack.c.b16 %v623, %v620
    %v897 = vpack.c.b16 %v624, %v621
    %v898 = vpack.c.b16 %v628, %v625
    %v899 = vpack.c.b16 %v629, %v626
    %v900 = vpack.c.b16 %v630, %v627
    %v901 = vpack.c.b16 %v634, %v631
    %v902 = vpack.c.b16 %v635, %v632
    %v903 = vpack.c.b16 %v636, %v633
    %v904 = vpack.c.b16 %v640, %v637
    %v905 = vpack.c.b16 %v641, %v638
    %v906 = vpack.c.b16 %v642, %v639
    %v907 = vpack.c.b16 %v646, %v643
    %v908 = vpack.c.b16 %v647, %v644
    %v909 = vpack.c.b16 %v648, %v645
    %v910 = vpack.c.b16 %v652, %v649
    %v911 = vpack.c.b16 %v653, %v650
    %v912 = vpack.c.b16 %v654, %v651
    %v913 = vpack.c.b16 %v658, %v655
    %v914 = vpack.c.b16 %v659, %v656
    %v915 = vpack.c.b16 %v660, %v657
    %v916 = vpack.c.b16 %v664, %v661
    %v917 = vpack.c.b16 %v665, %v662
    %v918 = vpack.c.b16 %v666, %v663
    %v919 = vpack.c.b16 %v670, %v667
    %v920 = vpack.c.b16 %v671, %v668
    %v921 = vpack.c.b16 %v672, %v669
    %v922 = vpack.c.b16 %v676, %v673
    %v923 = vpack.c.b16 %v677, %v674
    %v924 = vpack.c.b16 %v678, %v675
    %v925 = vpack.c.b16 %v682, %v679
    %v926 = vpack.c.b16 %v683, %v680
    %v927 = vpack.c.b16 %v684, %v681
    %v928 = vpack.c.b16 %v688, %v685
    %v929 = vpack.c.b16 %v689, %v686
    %v930 = vpack.c.b16 %v690, %v687
    %v931 = vpack.c.b16 %v694, %v691
    %v932 = vpack.c.b16 %v695, %v692
    %v933 = vpack.c.b16 %v696, %v693
    %v934 = vpack.c.b16 %v700, %v697
    %v935 = vpack.c.b16 %v701, %v698
    %v936 = vpack.c.b16 %v702, %v699
    %v937 = vpack.c.b16 %v706, %v703
    %v938 = vpack.c.b16 %v707, %v704
    %v939 = vpack.c.b16 %v708, %v705
    %v940 = vpack.c.b16 %v712, %v709
    %v941 = vpack.c.b16 %v713, %v710
    %v942 = vpack.c.b16 %v714, %v711
    %v943 = vpack.c.b16 %v718, %v715
    %v944 = vpack.c.b16 %v719, %v716
    %v945 = vpack.c.b16 %v720, %v717
    %v946 = vpack.c.b16 %v724, %v721
    %v947 = vpack.c.b16 %v725, %v722
    %v948 = vpack.c.b16 %v726, %v723
    %v949 = vpack.c.b16 %v730, %v727
    %v950 = vpack.c.b16 %v731, %v728
    %v951 = vpack.c.b16 %v732, %v729
    %v952 = vpack.c.b16 %v736, %v733
    %v953 = vpack.c.b16 %v737, %v734
    %v954 = vpack.c.b16 %v738, %v735
    %v955 = vpack.c.b16 %v742, %v739
    %v956 = vpack.c.b16 %v743, %v740
    %v957 = vpack.c.b16 %v744, %v741
    %v958 = vpack.c.b16 %v748, %v745
    %v959 = vpack.c.b16 %v749, %v746
    %v960 = vpack.c.b16 %v750, %v747
    %v961 = vpack.c.b16 %v754, %v751
    %v962 = vpack.c.b16 %v755, %v752
    %v963 = vpack.c.b16 %v756, %v753
    %v964 = vpack.c.b16 %v760, %v757
    %v965 = vpack.c.b16 %v761, %v758
    %v966 = vpack.c.b16 %v762, %v759
    %v967 = vpack.c.b16 %v766, %v763
    %v968 = vpack.c.b16 %v767, %v764
    %v969 = vpack.c.b16 %v768, %v765
    %v970 = vpack.c.b16 %v772, %v769
    %v971 = vpack.c.b16 %v773, %v770
    %v972 = vpack.c.b16 %v774, %v771
    %v973 = vpack.c.b16 %v778, %v775
    %v974 = vpack.c.b16 %v779, %v776
    %v975 = vpack.c.b16 %v780, %v777
    %v976 = vpack.c.b16 %v784, %v781
    %v977 = vpack.c.b16 %v785, %v782
    %v978 = vpack.c.b16 %v786, %v783
    %v979 = vpack.c.b16 %v790, %v787
    %v980 = vpack.c.b16 %v791, %v788
    %v981 = vpack.c.b16 %v792, %v789
    %v982 = vpack.c.b16 %v796, %v793
    %v983 = vpack.c.b16 %v797, %v794
    %v984 = vpack.c.b16 %v798, %v795
    %v985 = vpack.c.b16 %v802, %v799
    %v986 = vpack.c.b16 %v803, %v800
    %v987 = vpack.c.b16 %v804, %v801
    %v988 = vpack.c.b16 %v808, %v805
    %v989 = vpack.c.b16 %v809, %v806
    %v990 = vpack.c.b16 %v810, %v807
    %v991 = vpack.c.b16 %v814, %v811
    %v992 = vpack.c.b16 %v815, %v812
    %v993 = vpack.c.b16 %v816, %v813
    %v994 = vpack.c.b16 %v820, %v817
    %v995 = vpack.c.b16 %v821, %v818
    %v996 = vpack.c.b16 %v822, %v819
    %v997 = vpack.c.b16 %v826, %v823
    %v998 = vpack.c.b16 %v827, %v824
    %v999 = vpack.c.b16 %v828, %v825
    %v1000 = vpack.c.b16 %v832, %v829
    %v1001 = vpack.c.b16 %v833, %v830
    %v1002 = vpack.c.b16 %v834, %v831
    %v1003 = vpack.c.b16 %v838, %v835
    %v1004 = vpack.c.b16 %v839, %v836
    %v1005 = vpack.c.b16 %v840, %v837
    %v1006 = vpack.c.b16 %v844, %v841
    %v1007 = vpack.c.b16 %v845, %v842
    %v1008 = vpack.c.b16 %v846, %v843
    %v1009 = vpack.c.b16 %v850, %v847
    %v1010 = vpack.c.b16 %v851, %v848
    %v1011 = vpack.c.b16 %v852, %v849
    %v1012 = vpack.c.b16 %v856, %v853
    %v1013 = vpack.c.b16 %v857, %v854
    %v1014 = vpack.c.b16 %v858, %v855
    %v1015 = vpack.c.b16 %v862, %v859
    %v1016 = vpack.c.b16 %v863, %v860
    %v1017 = vpack.c.b16 %v864, %v861
    %v1018 = vpack.c.b16 %v868, %v865
    %v1019 = vpack.c.b16 %v869, %v866
    %v1020 = vpack.c.b16 %v870, %v867
    %v1021 = vpack.c.b16 %v874, %v871
    %v1022 = vpack.c.b16 %v875, %v872
    %v1023 = vpack.c.b16 %v876, %v873
    %v1024 = vpack.c.b16 %v880, %v877
    %v1025 = vpack.c.b16 %v881, %v878
    %v1026 = vpack.c.b16 %v882, %v879
    %1171 = vmatprep.subr.bf16.mxu0 %v884
    %1172 = vmatpush1.bf16.msra.mxu0 %v883
    %1173 = vmatprep.subr.bf16.mxu0 %v887
    %1174 = vmatpush1.bf16.msra.mxu0 %v886
    %1175 = vmatprep.subr.bf16.mxu0 %v890
    %1176 = vmatpush1.bf16.msra.mxu0 %v889
    %1177 = vmatprep.subr.bf16.mxu0 %v893
    %1178 = vmatpush1.bf16.msra.mxu0 %v892
    %1179 = vmatprep.subr.bf16.mxu0 %v896
    %1180 = vmatpush1.bf16.msra.mxu0 %v895
    %1181 = vmatprep.subr.bf16.mxu0 %v899
    %1182 = vmatpush1.bf16.msra.mxu0 %v898
    %1183 = vmatprep.subr.bf16.mxu0 %v902
    %1184 = vmatpush1.bf16.msra.mxu0 %v901
    %1185 = vmatprep.subr.bf16.mxu0 %v905
    %1186 = vmatpush1.bf16.msra.mxu0 %v904
    %1187 = vmatprep.subr.bf16.mxu0 %v908
    %1188 = vmatpush1.bf16.msra.mxu0 %v907
    %1189 = vmatprep.subr.bf16.mxu0 %v911
    %1190 = vmatpush1.bf16.msra.mxu0 %v910
    %1191 = vmatprep.subr.bf16.mxu0 %v914
    %1192 = vmatpush1.bf16.msra.mxu0 %v913
    %1193 = vmatprep.subr.bf16.mxu0 %v917
    %1194 = vmatpush1.bf16.msra.mxu0 %v916
    %1195 = vmatprep.subr.bf16.mxu0 %v920
    %1196 = vmatpush1.bf16.msra.mxu0 %v919
    %1197 = vmatprep.subr.bf16.mxu0 %v923
    %1198 = vmatpush1.bf16.msra.mxu0 %v922
    %1199 = vmatprep.subr.bf16.mxu0 %v926
    %1200 = vmatpush1.bf16.msra.mxu0 %v925
    %1201 = vmatprep.subr.bf16.mxu0 %v929
    %1202 = vmatpush1.bf16.msra.mxu0 %v928
    %1203 = vmatprep.mubr.bf16.mxu0 %v147
    %1204 = vmatmul.mubr.bf16.gmra.mrb[0].mxu0 %v146
    %v1205 = vpop.f32.mrb[0].mxu0
    %v1206 = vadd.f32 %v391, %v1205
    %v1207 = vpop.f32.mrb[0].mxu0
    %v1208 = vadd.f32 %v395, %v1207
    %v1209 = vpop.f32.mrb[0].mxu0
    %v1210 = vadd.f32 %v391, %v1209
    %v1211 = vpop.f32.mrb[0].mxu0
    %v1212 = vadd.f32 %v395, %v1211
    %1213 = vmatprep.mubr.bf16.mxu0 %v153
    %1214 = vmatmul.mubr.bf16.gmra.mrb[0].mxu0 %v152
    %v1215 = vpop.f32.mrb[0].mxu0
    %v1216 = vadd.f32 %v391, %v1215
    %v1217 = vpop.f32.mrb[0].mxu0
    %v1218 = vadd.f32 %v395, %v1217
    %v1219 = vpop.f32.mrb[0].mxu0
    %v1220 = vadd.f32 %v391, %v1219
    %v1221 = vpop.f32.mrb[0].mxu0
    %v1222 = vadd.f32 %v395, %v1221
    %1223 = vmatprep.mubr.bf16.mxu0 %v159
    %1224 = vmatmul.mubr.bf16.gmra.mrb[0].mxu0 %v158
    %v1225 = vpop.f32.mrb[0].mxu0
    %v1226 = vadd.f32 %v391, %v1225
    %v1227 = vpop.f32.mrb[0].mxu0
    %v1228 = vadd.f32 %v395, %v1227
    %v1229 = vpop.f32.mrb[0].mxu0
    %v1230 = vadd.f32 %v391, %v1229
    %v1231 = vpop.f32.mrb[0].mxu0
    %v1232 = vadd.f32 %v395, %v1231
    %1233 = vmatprep.mubr.bf16.mxu0 %v165
    %1234 = vmatmul.mubr.bf16.gmra.mrb[0].mxu0 %v164
    %v1235 = vpop.f32.mrb[0].mxu0
    %v1236 = vadd.f32 %v391, %v1235
    %v1237 = vpop.f32.mrb[0].mxu0
    %v1238 = vadd.f32 %v395, %v1237
    %v1239 = vpop.f32.mrb[0].mxu0
    %v1240 = vadd.f32 %v391, %v1239
    %v1241 = vpop.f32.mrb[0].mxu0
    %v1242 = vadd.f32 %v395, %v1241
    %1243 = vmatprep.mubr.bf16.mxu0 %v171
    %1244 = vmatmul.mubr.bf16.gmra.mrb[0].mxu0 %v170
    %v1245 = vpop.f32.mrb[0].mxu0
    %v1246 = vadd.f32 %v391, %v1245
    %v1247 = vpop.f32.mrb[0].mxu0
    %v1248 = vadd.f32 %v395, %v1247
    %v1249 = vpop.f32.mrb[0].mxu0
    %v1250 = vadd.f32 %v391, %v1249
    %v1251 = vpop.f32.mrb[0].mxu0
    %v1252 = vadd.f32 %v395, %v1251
    %1253 = vmatprep.mubr.bf16.mxu0 %v177
    %1254 = vmatmul.mubr.bf16.gmra.mrb[0].mxu0 %v176
    %v1255 = vpop.f32.mrb[0].mxu0
    %v1256 = vadd.f32 %v391, %v1255
    %v1257 = vpop.f32.mrb[0].mxu0
    %v1258 = vadd.f32 %v395, %v1257
    %v1259 = vpop.f32.mrb[0].mxu0
    %v1260 = vadd.f32 %v391, %v1259
    %v1261 = vpop.f32.mrb[0].mxu0
    %v1262 = vadd.f32 %v395, %v1261
    %1263 = vmatprep.mubr.bf16.mxu0 %v183
    %1264 = vmatmul.mubr.bf16.gmra.mrb[0].mxu0 %v182
    %v1265 = vpop.f32.mrb[0].mxu0
    %v1266 = vadd.f32 %v391, %v1265
    %v1267 = vpop.f32.mrb[0].mxu0
    %v1268 = vadd.f32 %v395, %v1267
    %v1269 = vpop.f32.mrb[0].mxu0
    %v1270 = vadd.f32 %v391, %v1269
    %v1271 = vpop.f32.mrb[0].mxu0
    %v1272 = vadd.f32 %v395, %v1271
    %1273 = vmatprep.mubr.bf16.mxu0 %v189
    %1274 = vmatmul.mubr.bf16.gmra.mrb[0].mxu0 %v188
    %v1275 = vpop.f32.mrb[0].mxu0
    %v1276 = vadd.f32 %v391, %v1275
    %v1277 = vpop.f32.mrb[0].mxu0
    %v1278 = vadd.f32 %v395, %v1277
    %v1279 = vpop.f32.mrb[0].mxu0
    %v1280 = vadd.f32 %v391, %v1279
    %v1281 = vpop.f32.mrb[0].mxu0
    %v1282 = vadd.f32 %v395, %v1281
    %1283 = vdwg.mxu0
    %1284 = vmatprep.subr.bf16.mxu0 %v932
    %1285 = vmatpush1.bf16.msra.mxu0 %v931
    %1286 = vmatprep.subr.bf16.mxu0 %v935
    %1287 = vmatpush1.bf16.msra.mxu0 %v934
    %1288 = vmatprep.subr.bf16.mxu0 %v938
    %1289 = vmatpush1.bf16.msra.mxu0 %v937
    %1290 = vmatprep.subr.bf16.mxu0 %v941
    %1291 = vmatpush1.bf16.msra.mxu0 %v940
    %1292 = vmatprep.subr.bf16.mxu0 %v944
    %1293 = vmatpush1.bf16.msra.mxu0 %v943
    %1294 = vmatprep.subr.bf16.mxu0 %v947
    %1295 = vmatpush1.bf16.msra.mxu0 %v946
    %1296 = vmatprep.subr.bf16.mxu0 %v950
    %1297 = vmatpush1.bf16.msra.mxu0 %v949
    %1298 = vmatprep.subr.bf16.mxu0 %v953
    %1299 = vmatpush1.bf16.msra.mxu0 %v952
    %1300 = vmatprep.subr.bf16.mxu0 %v956
    %1301 = vmatpush1.bf16.msra.mxu0 %v955
    %1302 = vmatprep.subr.bf16.mxu0 %v959
    %1303 = vmatpush1.bf16.msra.mxu0 %v958
    %1304 = vmatprep.subr.bf16.mxu0 %v962
    %1305 = vmatpush1.bf16.msra.mxu0 %v961
    %1306 = vmatprep.subr.bf16.mxu0 %v965
    %1307 = vmatpush1.bf16.msra.mxu0 %v964
    %1308 = vmatprep.subr.bf16.mxu0 %v968
    %1309 = vmatpush1.bf16.msra.mxu0 %v967
    %1310 = vmatprep.subr.bf16.mxu0 %v971
    %1311 = vmatpush1.bf16.msra.mxu0 %v970
    %1312 = vmatprep.subr.bf16.mxu0 %v974
    %1313 = vmatpush1.bf16.msra.mxu0 %v973
    %1314 = vmatprep.subr.bf16.mxu0 %v977
    %1315 = vmatpush1.bf16.msra.mxu0 %v976
    %1316 = vmatprep.mubr.bf16.mxu0 %v149
    %1317 = vmatmul.mubr.bf16.gmra.mrb[0].mxu0 %v148
    %v1318 = vpop.f32.mrb[0].mxu0
    %v1319 = vadd.f32 %v1206, %v1318
    %v1320 = vpop.f32.mrb[0].mxu0
    %v1321 = vadd.f32 %v1208, %v1320
    %v1322 = vpop.f32.mrb[0].mxu0
    %v1323 = vadd.f32 %v1210, %v1322
    %v1324 = vpop.f32.mrb[0].mxu0
    %v1325 = vadd.f32 %v1212, %v1324
    %1326 = vmatprep.mubr.bf16.mxu0 %v155
    %1327 = vmatmul.mubr.bf16.gmra.mrb[0].mxu0 %v154
    %v1328 = vpop.f32.mrb[0].mxu0
    %v1329 = vadd.f32 %v1216, %v1328
    %v1330 = vpop.f32.mrb[0].mxu0
    %v1331 = vadd.f32 %v1218, %v1330
    %v1332 = vpop.f32.mrb[0].mxu0
    %v1333 = vadd.f32 %v1220, %v1332
    %v1334 = vpop.f32.mrb[0].mxu0
    %v1335 = vadd.f32 %v1222, %v1334
    %1336 = vmatprep.mubr.bf16.mxu0 %v161
    %1337 = vmatmul.mubr.bf16.gmra.mrb[0].mxu0 %v160
    %v1338 = vpop.f32.mrb[0].mxu0
    %v1339 = vadd.f32 %v1226, %v1338
    %v1340 = vpop.f32.mrb[0].mxu0
    %v1341 = vadd.f32 %v1228, %v1340
    %v1342 = vpop.f32.mrb[0].mxu0
    %v1343 = vadd.f32 %v1230, %v1342
    %v1344 = vpop.f32.mrb[0].mxu0
    %v1345 = vadd.f32 %v1232, %v1344
    %1346 = vmatprep.mubr.bf16.mxu0 %v167
    %1347 = vmatmul.mubr.bf16.gmra.mrb[0].mxu0 %v166
    %v1348 = vpop.f32.mrb[0].mxu0
    %v1349 = vadd.f32 %v1236, %v1348
    %v1350 = vpop.f32.mrb[0].mxu0
    %v1351 = vadd.f32 %v1238, %v1350
    %v1352 = vpop.f32.mrb[0].mxu0
    %v1353 = vadd.f32 %v1240, %v1352
    %v1354 = vpop.f32.mrb[0].mxu0
    %v1355 = vadd.f32 %v1242, %v1354
    %1356 = vmatprep.mubr.bf16.mxu0 %v173
    %1357 = vmatmul.mubr.bf16.gmra.mrb[0].mxu0 %v172
    %v1358 = vpop.f32.mrb[0].mxu0
    %v1359 = vadd.f32 %v1246, %v1358
    %v1360 = vpop.f32.mrb[0].mxu0
    %v1361 = vadd.f32 %v1248, %v1360
    %v1362 = vpop.f32.mrb[0].mxu0
    %v1363 = vadd.f32 %v1250, %v1362
    %v1364 = vpop.f32.mrb[0].mxu0
    %v1365 = vadd.f32 %v1252, %v1364
    %1366 = vmatprep.mubr.bf16.mxu0 %v179
    %1367 = vmatmul.mubr.bf16.gmra.mrb[0].mxu0 %v178
    %v1368 = vpop.f32.mrb[0].mxu0
    %v1369 = vadd.f32 %v1256, %v1368
    %v1370 = vpop.f32.mrb[0].mxu0
    %v1371 = vadd.f32 %v1258, %v1370
    %v1372 = vpop.f32.mrb[0].mxu0
    %v1373 = vadd.f32 %v1260, %v1372
    %v1374 = vpop.f32.mrb[0].mxu0
    %v1375 = vadd.f32 %v1262, %v1374
    %1376 = vmatprep.mubr.bf16.mxu0 %v185
    %1377 = vmatmul.mubr.bf16.gmra.mrb[0].mxu0 %v184
    %v1378 = vpop.f32.mrb[0].mxu0
    %v1379 = vadd.f32 %v1266, %v1378
    %v1380 = vpop.f32.mrb[0].mxu0
    %v1381 = vadd.f32 %v1268, %v1380
    %v1382 = vpop.f32.mrb[0].mxu0
    %v1383 = vadd.f32 %v1270, %v1382
    %v1384 = vpop.f32.mrb[0].mxu0
    %v1385 = vadd.f32 %v1272, %v1384
    %1386 = vmatprep.mubr.bf16.mxu0 %v191
    %1387 = vmatmul.mubr.bf16.gmra.mrb[0].mxu0 %v190
    %v1388 = vpop.f32.mrb[0].mxu0
    %v1389 = vadd.f32 %v1276, %v1388
    %v1390 = vpop.f32.mrb[0].mxu0
    %v1391 = vadd.f32 %v1278, %v1390
    %v1392 = vpop.f32.mrb[0].mxu0
    %v1393 = vadd.f32 %v1280, %v1392
    %v1394 = vpop.f32.mrb[0].mxu0
    %v1395 = vadd.f32 %v1282, %v1394
    %1396 = vdwg.mxu0
    %1397 = vmatprep.subr.bf16.mxu0 %v980
    %1398 = vmatpush1.bf16.msra.mxu0 %v979
    %1399 = vmatprep.subr.bf16.mxu0 %v983
    %1400 = vmatpush1.bf16.msra.mxu0 %v982
    %1401 = vmatprep.subr.bf16.mxu0 %v986
    %1402 = vmatpush1.bf16.msra.mxu0 %v985
    %1403 = vmatprep.subr.bf16.mxu0 %v989
    %1404 = vmatpush1.bf16.msra.mxu0 %v988
    %1405 = vmatprep.subr.bf16.mxu0 %v992
    %1406 = vmatpush1.bf16.msra.mxu0 %v991
    %1407 = vmatprep.subr.bf16.mxu0 %v995
    %1408 = vmatpush1.bf16.msra.mxu0 %v994
    %1409 = vmatprep.subr.bf16.mxu0 %v998
    %1410 = vmatpush1.bf16.msra.mxu0 %v997
    %1411 = vmatprep.subr.bf16.mxu0 %v1001
    %1412 = vmatpush1.bf16.msra.mxu0 %v1000
    %1413 = vmatprep.subr.bf16.mxu0 %v1004
    %1414 = vmatpush1.bf16.msra.mxu0 %v1003
    %1415 = vmatprep.subr.bf16.mxu0 %v1007
    %1416 = vmatpush1.bf16.msra.mxu0 %v1006
    %1417 = vmatprep.subr.bf16.mxu0 %v1010
    %1418 = vmatpush1.bf16.msra.mxu0 %v1009
    %1419 = vmatprep.subr.bf16.mxu0 %v1013
    %1420 = vmatpush1.bf16.msra.mxu0 %v1012
    %1421 = vmatprep.subr.bf16.mxu0 %v1016
    %1422 = vmatpush1.bf16.msra.mxu0 %v1015
    %1423 = vmatprep.subr.bf16.mxu0 %v1019
    %1424 = vmatpush1.bf16.msra.mxu0 %v1018
    %1425 = vmatprep.subr.bf16.mxu0 %v1022
    %1426 = vmatpush1.bf16.msra.mxu0 %v1021
    %1427 = vmatprep.subr.bf16.mxu0 %v1025
    %1428 = vmatpush1.bf16.msra.mxu0 %v1024
    %1429 = vmatprep.mubr.bf16.mxu0 %v151
    %1430 = vmatmul.mubr.bf16.gmra.mrb[0].mxu0 %v150
    %v1431 = vpop.f32.mrb[0].mxu0
    %v1432 = vadd.f32 %v1319, %v1431
    %v1433 = vpop.f32.mrb[0].mxu0
    %v1434 = vadd.f32 %v1321, %v1433
    %v1435 = vpop.f32.mrb[0].mxu0
    %v1436 = vadd.f32 %v1323, %v1435
    %v1437 = vpop.f32.mrb[0].mxu0
    %v1438 = vadd.f32 %v1325, %v1437
    %1439 = vmatprep.mubr.bf16.mxu0 %v157
    %1440 = vmatmul.mubr.bf16.gmra.mrb[0].mxu0 %v156
    %v1441 = vpop.f32.mrb[0].mxu0
    %v1442 = vadd.f32 %v1329, %v1441
    %v1443 = vpop.f32.mrb[0].mxu0
    %v1444 = vadd.f32 %v1331, %v1443
    %v1445 = vpop.f32.mrb[0].mxu0
    %v1446 = vadd.f32 %v1333, %v1445
    %v1447 = vpop.f32.mrb[0].mxu0
    %v1448 = vadd.f32 %v1335, %v1447
    %1449 = vmatprep.mubr.bf16.mxu0 %v163
    %1450 = vmatmul.mubr.bf16.gmra.mrb[0].mxu0 %v162
    %v1451 = vpop.f32.mrb[0].mxu0
    %v1452 = vadd.f32 %v1339, %v1451
    %v1453 = vpop.f32.mrb[0].mxu0
    %v1454 = vadd.f32 %v1341, %v1453
    %v1455 = vpop.f32.mrb[0].mxu0
    %v1456 = vadd.f32 %v1343, %v1455
    %v1457 = vpop.f32.mrb[0].mxu0
    %v1458 = vadd.f32 %v1345, %v1457
    %1459 = vmatprep.mubr.bf16.mxu0 %v169
    %1460 = vmatmul.mubr.bf16.gmra.mrb[0].mxu0 %v168
    %v1461 = vpop.f32.mrb[0].mxu0
    %v1462 = vadd.f32 %v1349, %v1461
    %v1463 = vpop.f32.mrb[0].mxu0
    %v1464 = vadd.f32 %v1351, %v1463
    %v1465 = vpop.f32.mrb[0].mxu0
    %v1466 = vadd.f32 %v1353, %v1465
    %v1467 = vpop.f32.mrb[0].mxu0
    %v1468 = vadd.f32 %v1355, %v1467
    %1469 = vmatprep.mubr.bf16.mxu0 %v175
    %1470 = vmatmul.mubr.bf16.gmra.mrb[0].mxu0 %v174
    %v1471 = vpop.f32.mrb[0].mxu0
    %v1472 = vadd.f32 %v1359, %v1471
    %v1473 = vpop.f32.mrb[0].mxu0
    %v1474 = vadd.f32 %v1361, %v1473
    %v1475 = vpop.f32.mrb[0].mxu0
    %v1476 = vadd.f32 %v1363, %v1475
    %v1477 = vpop.f32.mrb[0].mxu0
    %v1478 = vadd.f32 %v1365, %v1477
    %1479 = vmatprep.mubr.bf16.mxu0 %v181
    %1480 = vmatmul.mubr.bf16.gmra.mrb[0].mxu0 %v180
    %v1481 = vpop.f32.mrb[0].mxu0
    %v1482 = vadd.f32 %v1369, %v1481
    %v1483 = vpop.f32.mrb[0].mxu0
    %v1484 = vadd.f32 %v1371, %v1483
    %v1485 = vpop.f32.mrb[0].mxu0
    %v1486 = vadd.f32 %v1373, %v1485
    %v1487 = vpop.f32.mrb[0].mxu0
    %v1488 = vadd.f32 %v1375, %v1487
    %1489 = vmatprep.mubr.bf16.mxu0 %v187
    %1490 = vmatmul.mubr.bf16.gmra.mrb[0].mxu0 %v186
    %v1491 = vpop.f32.mrb[0].mxu0
    %v1492 = vadd.f32 %v1379, %v1491
    %v1493 = vpop.f32.mrb[0].mxu0
    %v1494 = vadd.f32 %v1381, %v1493
    %v1495 = vpop.f32.mrb[0].mxu0
    %v1496 = vadd.f32 %v1383, %v1495
    %v1497 = vpop.f32.mrb[0].mxu0
    %v1498 = vadd.f32 %v1385, %v1497
    %1499 = vmatprep.mubr.bf16.mxu0 %v193
    %1500 = vmatmul.mubr.bf16.gmra.mrb[0].mxu0 %v192
    %v1501 = vpop.f32.mrb[0].mxu0
    %v1502 = vadd.f32 %v1389, %v1501
    %v1503 = vpop.f32.mrb[0].mxu0
    %v1504 = vadd.f32 %v1391, %v1503
    %v1505 = vpop.f32.mrb[0].mxu0
    %v1506 = vadd.f32 %v1393, %v1505
    %v1507 = vpop.f32.mrb[0].mxu0
    %v1508 = vadd.f32 %v1395, %v1507
    %1509 = vdwg.mxu0
    %1510 = vmatprep.subr.bf16.mxu0 0
    %1511 = vmatpush1.bf16.msra.mxu0 %v885
    %1512 = vmatprep.subr.bf16.mxu0 0
    %1513 = vmatpush1.bf16.msra.mxu0 %v888
    %1514 = vmatprep.subr.bf16.mxu0 0
    %1515 = vmatpush1.bf16.msra.mxu0 %v891
    %1516 = vmatprep.subr.bf16.mxu0 0
    %1517 = vmatpush1.bf16.msra.mxu0 %v894
    %1518 = vmatprep.subr.bf16.mxu0 0
    %1519 = vmatpush1.bf16.msra.mxu0 %v897
    %1520 = vmatprep.subr.bf16.mxu0 0
    %1521 = vmatpush1.bf16.msra.mxu0 %v900
    %1522 = vmatprep.subr.bf16.mxu0 0
    %1523 = vmatpush1.bf16.msra.mxu0 %v903
    %1524 = vmatprep.subr.bf16.mxu0 0
    %1525 = vmatpush1.bf16.msra.mxu0 %v906
    %1526 = vmatprep.subr.bf16.mxu0 0
    %1527 = vmatpush1.bf16.msra.mxu0 %v909
    %1528 = vmatprep.subr.bf16.mxu0 0
    %1529 = vmatpush1.bf16.msra.mxu0 %v912
    %1530 = vmatprep.subr.bf16.mxu0 0
    %1531 = vmatpush1.bf16.msra.mxu0 %v915
    %1532 = vmatprep.subr.bf16.mxu0 0
    %1533 = vmatpush1.bf16.msra.mxu0 %v918
    %1534 = vmatprep.subr.bf16.mxu0 0
    %1535 = vmatpush1.bf16.msra.mxu0 %v921
    %1536 = vmatprep.subr.bf16.mxu0 0
    %1537 = vmatpush1.bf16.msra.mxu0 %v924
    %1538 = vmatprep.subr.bf16.mxu0 0
    %1539 = vmatpush1.bf16.msra.mxu0 %v927
    %1540 = vmatprep.subr.bf16.mxu0 0
    %1541 = vmatpush1.bf16.msra.mxu0 %v930
    %1542 = vmatprep.mubr.bf16.mxu0 %v147
    %1543 = vmatmul.mubr.bf16.gmra.mrb[0].mxu0 %v146
    %v1544 = vpop.f32.mrb[0].mxu0
    %v1545 = vadd.f32 %v399, %v1544
    %v1546 = vpop.f32.mrb[0].mxu0
    %v1547 = vpop.f32.mrb[0].mxu0
    %v1548 = vadd.f32 %v399, %v1547
    %v1549 = vpop.f32.mrb[0].mxu0
    %1550 = vmatprep.mubr.bf16.mxu0 %v153
    %1551 = vmatmul.mubr.bf16.gmra.mrb[0].mxu0 %v152
    %v1552 = vpop.f32.mrb[0].mxu0
    %v1553 = vadd.f32 %v399, %v1552
    %v1554 = vpop.f32.mrb[0].mxu0
    %v1555 = vpop.f32.mrb[0].mxu0
    %v1556 = vadd.f32 %v399, %v1555
    %v1557 = vpop.f32.mrb[0].mxu0
    %1558 = vmatprep.mubr.bf16.mxu0 %v159
    %1559 = vmatmul.mubr.bf16.gmra.mrb[0].mxu0 %v158
    %v1560 = vpop.f32.mrb[0].mxu0
    %v1561 = vadd.f32 %v399, %v1560
    %v1562 = vpop.f32.mrb[0].mxu0
    %v1563 = vpop.f32.mrb[0].mxu0
    %v1564 = vadd.f32 %v399, %v1563
    %v1565 = vpop.f32.mrb[0].mxu0
    %1566 = vmatprep.mubr.bf16.mxu0 %v165
    %1567 = vmatmul.mubr.bf16.gmra.mrb[0].mxu0 %v164
    %v1568 = vpop.f32.mrb[0].mxu0
    %v1569 = vadd.f32 %v399, %v1568
    %v1570 = vpop.f32.mrb[0].mxu0
    %v1571 = vpop.f32.mrb[0].mxu0
    %v1572 = vadd.f32 %v399, %v1571
    %v1573 = vpop.f32.mrb[0].mxu0
    %1574 = vmatprep.mubr.bf16.mxu0 %v171
    %1575 = vmatmul.mubr.bf16.gmra.mrb[0].mxu0 %v170
    %v1576 = vpop.f32.mrb[0].mxu0
    %v1577 = vadd.f32 %v399, %v1576
    %v1578 = vpop.f32.mrb[0].mxu0
    %v1579 = vpop.f32.mrb[0].mxu0
    %v1580 = vadd.f32 %v399, %v1579
    %v1581 = vpop.f32.mrb[0].mxu0
    %1582 = vmatprep.mubr.bf16.mxu0 %v177
    %1583 = vmatmul.mubr.bf16.gmra.mrb[0].mxu0 %v176
    %v1584 = vpop.f32.mrb[0].mxu0
    %v1585 = vadd.f32 %v399, %v1584
    %v1586 = vpop.f32.mrb[0].mxu0
    %v1587 = vpop.f32.mrb[0].mxu0
    %v1588 = vadd.f32 %v399, %v1587
    %v1589 = vpop.f32.mrb[0].mxu0
    %1590 = vmatprep.mubr.bf16.mxu0 %v183
    %1591 = vmatmul.mubr.bf16.gmra.mrb[0].mxu0 %v182
    %v1592 = vpop.f32.mrb[0].mxu0
    %v1593 = vadd.f32 %v399, %v1592
    %v1594 = vpop.f32.mrb[0].mxu0
    %v1595 = vpop.f32.mrb[0].mxu0
    %v1596 = vadd.f32 %v399, %v1595
    %v1597 = vpop.f32.mrb[0].mxu0
    %1598 = vmatprep.mubr.bf16.mxu0 %v189
    %1599 = vmatmul.mubr.bf16.gmra.mrb[0].mxu0 %v188
    %v1600 = vpop.f32.mrb[0].mxu0
    %v1601 = vadd.f32 %v399, %v1600
    %v1602 = vpop.f32.mrb[0].mxu0
    %v1603 = vpop.f32.mrb[0].mxu0
    %v1604 = vadd.f32 %v399, %v1603
    %v1605 = vpop.f32.mrb[0].mxu0
    %1606 = vdwg.mxu0
    %1607 = vmatprep.subr.bf16.mxu0 0
    %1608 = vmatpush1.bf16.msra.mxu0 %v933
    %1609 = vmatprep.subr.bf16.mxu0 0
    %1610 = vmatpush1.bf16.msra.mxu0 %v936
    %1611 = vmatprep.subr.bf16.mxu0 0
    %1612 = vmatpush1.bf16.msra.mxu0 %v939
    %1613 = vmatprep.subr.bf16.mxu0 0
    %1614 = vmatpush1.bf16.msra.mxu0 %v942
    %1615 = vmatprep.subr.bf16.mxu0 0
    %1616 = vmatpush1.bf16.msra.mxu0 %v945
    %1617 = vmatprep.subr.bf16.mxu0 0
    %1618 = vmatpush1.bf16.msra.mxu0 %v948
    %1619 = vmatprep.subr.bf16.mxu0 0
    %1620 = vmatpush1.bf16.msra.mxu0 %v951
    %1621 = vmatprep.subr.bf16.mxu0 0
    %1622 = vmatpush1.bf16.msra.mxu0 %v954
    %1623 = vmatprep.subr.bf16.mxu0 0
    %1624 = vmatpush1.bf16.msra.mxu0 %v957
    %1625 = vmatprep.subr.bf16.mxu0 0
    %1626 = vmatpush1.bf16.msra.mxu0 %v960
    %1627 = vmatprep.subr.bf16.mxu0 0
    %1628 = vmatpush1.bf16.msra.mxu0 %v963
    %1629 = vmatprep.subr.bf16.mxu0 0
    %1630 = vmatpush1.bf16.msra.mxu0 %v966
    %1631 = vmatprep.subr.bf16.mxu0 0
    %1632 = vmatpush1.bf16.msra.mxu0 %v969
    %1633 = vmatprep.subr.bf16.mxu0 0
    %1634 = vmatpush1.bf16.msra.mxu0 %v972
    %1635 = vmatprep.subr.bf16.mxu0 0
    %1636 = vmatpush1.bf16.msra.mxu0 %v975
    %1637 = vmatprep.subr.bf16.mxu0 0
    %1638 = vmatpush1.bf16.msra.mxu0 %v978
    %1639 = vmatprep.mubr.bf16.mxu0 %v149
    %1640 = vmatmul.mubr.bf16.gmra.mrb[0].mxu0 %v148
    %v1641 = vpop.f32.mrb[0].mxu0
    %v1642 = vadd.f32 %v1545, %v1641
    %v1643 = vpop.f32.mrb[0].mxu0
    %v1644 = vpop.f32.mrb[0].mxu0
    %v1645 = vadd.f32 %v1548, %v1644
    %v1646 = vpop.f32.mrb[0].mxu0
    %1647 = vmatprep.mubr.bf16.mxu0 %v155
    %1648 = vmatmul.mubr.bf16.gmra.mrb[0].mxu0 %v154
    %v1649 = vpop.f32.mrb[0].mxu0
    %v1650 = vadd.f32 %v1553, %v1649
    %v1651 = vpop.f32.mrb[0].mxu0
    %v1652 = vpop.f32.mrb[0].mxu0
    %v1653 = vadd.f32 %v1556, %v1652
    %v1654 = vpop.f32.mrb[0].mxu0
    %1655 = vmatprep.mubr.bf16.mxu0 %v161
    %1656 = vmatmul.mubr.bf16.gmra.mrb[0].mxu0 %v160
    %v1657 = vpop.f32.mrb[0].mxu0
    %v1658 = vadd.f32 %v1561, %v1657
    %v1659 = vpop.f32.mrb[0].mxu0
    %v1660 = vpop.f32.mrb[0].mxu0
    %v1661 = vadd.f32 %v1564, %v1660
    %v1662 = vpop.f32.mrb[0].mxu0
    %1663 = vmatprep.mubr.bf16.mxu0 %v167
    %1664 = vmatmul.mubr.bf16.gmra.mrb[0].mxu0 %v166
    %v1665 = vpop.f32.mrb[0].mxu0
    %v1666 = vadd.f32 %v1569, %v1665
    %v1667 = vpop.f32.mrb[0].mxu0
    %v1668 = vpop.f32.mrb[0].mxu0
    %v1669 = vadd.f32 %v1572, %v1668
    %v1670 = vpop.f32.mrb[0].mxu0
    %1671 = vmatprep.mubr.bf16.mxu0 %v173
    %1672 = vmatmul.mubr.bf16.gmra.mrb[0].mxu0 %v172
    %v1673 = vpop.f32.mrb[0].mxu0
    %v1674 = vadd.f32 %v1577, %v1673
    %v1675 = vpop.f32.mrb[0].mxu0
    %v1676 = vpop.f32.mrb[0].mxu0
    %v1677 = vadd.f32 %v1580, %v1676
    %v1678 = vpop.f32.mrb[0].mxu0
    %1679 = vmatprep.mubr.bf16.mxu0 %v179
    %1680 = vmatmul.mubr.bf16.gmra.mrb[0].mxu0 %v178
    %v1681 = vpop.f32.mrb[0].mxu0
    %v1682 = vadd.f32 %v1585, %v1681
    %v1683 = vpop.f32.mrb[0].mxu0
    %v1684 = vpop.f32.mrb[0].mxu0
    %v1685 = vadd.f32 %v1588, %v1684
    %v1686 = vpop.f32.mrb[0].mxu0
    %1687 = vmatprep.mubr.bf16.mxu0 %v185
    %1688 = vmatmul.mubr.bf16.gmra.mrb[0].mxu0 %v184
    %v1689 = vpop.f32.mrb[0].mxu0
    %v1690 = vadd.f32 %v1593, %v1689
    %v1691 = vpop.f32.mrb[0].mxu0
    %v1692 = vpop.f32.mrb[0].mxu0
    %v1693 = vadd.f32 %v1596, %v1692
    %v1694 = vpop.f32.mrb[0].mxu0
    %1695 = vmatprep.mubr.bf16.mxu0 %v191
    %1696 = vmatmul.mubr.bf16.gmra.mrb[0].mxu0 %v190
    %v1697 = vpop.f32.mrb[0].mxu0
    %v1698 = vadd.f32 %v1601, %v1697
    %v1699 = vpop.f32.mrb[0].mxu0
    %v1700 = vpop.f32.mrb[0].mxu0
    %v1701 = vadd.f32 %v1604, %v1700
    %v1702 = vpop.f32.mrb[0].mxu0
    %1703 = vdwg.mxu0
    %1704 = vmatprep.subr.bf16.mxu0 0
    %1705 = vmatpush1.bf16.msra.mxu0 %v981
    %1706 = vmatprep.subr.bf16.mxu0 0
    %1707 = vmatpush1.bf16.msra.mxu0 %v984
    %1708 = vmatprep.subr.bf16.mxu0 0
    %1709 = vmatpush1.bf16.msra.mxu0 %v987
    %1710 = vmatprep.subr.bf16.mxu0 0
    %1711 = vmatpush1.bf16.msra.mxu0 %v990
    %1712 = vmatprep.subr.bf16.mxu0 0
    %1713 = vmatpush1.bf16.msra.mxu0 %v993
    %1714 = vmatprep.subr.bf16.mxu0 0
    %1715 = vmatpush1.bf16.msra.mxu0 %v996
    %1716 = vmatprep.subr.bf16.mxu0 0
    %1717 = vmatpush1.bf16.msra.mxu0 %v999
    %1718 = vmatprep.subr.bf16.mxu0 0
    %1719 = vmatpush1.bf16.msra.mxu0 %v1002
    %1720 = vmatprep.subr.bf16.mxu0 0
    %1721 = vmatpush1.bf16.msra.mxu0 %v1005
    %1722 = vmatprep.subr.bf16.mxu0 0
    %1723 = vmatpush1.bf16.msra.mxu0 %v1008
    %1724 = vmatprep.subr.bf16.mxu0 0
    %1725 = vmatpush1.bf16.msra.mxu0 %v1011
    %1726 = vmatprep.subr.bf16.mxu0 0
    %1727 = vmatpush1.bf16.msra.mxu0 %v1014
    %1728 = vmatprep.subr.bf16.mxu0 0
    %1729 = vmatpush1.bf16.msra.mxu0 %v1017
    %1730 = vmatprep.subr.bf16.mxu0 0
    %1731 = vmatpush1.bf16.msra.mxu0 %v1020
    %1732 = vmatprep.subr.bf16.mxu0 0
    %1733 = vmatpush1.bf16.msra.mxu0 %v1023
    %1734 = vmatprep.subr.bf16.mxu0 0
    %1735 = vmatpush1.bf16.msra.mxu0 %v1026
    %1736 = vmatprep.mubr.bf16.mxu0 %v151
    %1737 = vmatmul.mubr.bf16.gmra.mrb[0].mxu0 %v150
    %v1738 = vpop.f32.mrb[0].mxu0
    %v1739 = vadd.f32 %v1642, %v1738
    %v1740 = vpop.f32.mrb[0].mxu0
    %v1741 = vpop.f32.mrb[0].mxu0
    %v1742 = vadd.f32 %v1645, %v1741
    %v1743 = vpop.f32.mrb[0].mxu0
    %1744 = vmatprep.mubr.bf16.mxu0 %v157
    %1745 = vmatmul.mubr.bf16.gmra.mrb[0].mxu0 %v156
    %v1746 = vpop.f32.mrb[0].mxu0
    %v1747 = vadd.f32 %v1650, %v1746
    %v1748 = vpop.f32.mrb[0].mxu0
    %v1749 = vpop.f32.mrb[0].mxu0
    %v1750 = vadd.f32 %v1653, %v1749
    %v1751 = vpop.f32.mrb[0].mxu0
    %1752 = vmatprep.mubr.bf16.mxu0 %v163
    %1753 = vmatmul.mubr.bf16.gmra.mrb[0].mxu0 %v162
    %v1754 = vpop.f32.mrb[0].mxu0
    %v1755 = vadd.f32 %v1658, %v1754
    %v1756 = vpop.f32.mrb[0].mxu0
    %v1757 = vpop.f32.mrb[0].mxu0
    %v1758 = vadd.f32 %v1661, %v1757
    %v1759 = vpop.f32.mrb[0].mxu0
    %1760 = vmatprep.mubr.bf16.mxu0 %v169
    %1761 = vmatmul.mubr.bf16.gmra.mrb[0].mxu0 %v168
    %v1762 = vpop.f32.mrb[0].mxu0
    %v1763 = vadd.f32 %v1666, %v1762
    %v1764 = vpop.f32.mrb[0].mxu0
    %v1765 = vpop.f32.mrb[0].mxu0
    %v1766 = vadd.f32 %v1669, %v1765
    %v1767 = vpop.f32.mrb[0].mxu0
    %1768 = vmatprep.mubr.bf16.mxu0 %v175
    %1769 = vmatmul.mubr.bf16.gmra.mrb[0].mxu0 %v174
    %v1770 = vpop.f32.mrb[0].mxu0
    %v1771 = vadd.f32 %v1674, %v1770
    %v1772 = vpop.f32.mrb[0].mxu0
    %v1773 = vpop.f32.mrb[0].mxu0
    %v1774 = vadd.f32 %v1677, %v1773
    %v1775 = vpop.f32.mrb[0].mxu0
    %1776 = vmatprep.mubr.bf16.mxu0 %v181
    %1777 = vmatmul.mubr.bf16.gmra.mrb[0].mxu0 %v180
    %v1778 = vpop.f32.mrb[0].mxu0
    %v1779 = vadd.f32 %v1682, %v1778
    %v1780 = vpop.f32.mrb[0].mxu0
    %v1781 = vpop.f32.mrb[0].mxu0
    %v1782 = vadd.f32 %v1685, %v1781
    %v1783 = vpop.f32.mrb[0].mxu0
    %1784 = vmatprep.mubr.bf16.mxu0 %v187
    %1785 = vmatmul.mubr.bf16.gmra.mrb[0].mxu0 %v186
    %v1786 = vpop.f32.mrb[0].mxu0
    %v1787 = vadd.f32 %v1690, %v1786
    %v1788 = vpop.f32.mrb[0].mxu0
    %v1789 = vpop.f32.mrb[0].mxu0
    %v1790 = vadd.f32 %v1693, %v1789
    %v1791 = vpop.f32.mrb[0].mxu0
    %1792 = vmatprep.mubr.bf16.mxu0 %v193
    %1793 = vmatmul.mubr.bf16.gmra.mrb[0].mxu0 %v192
    %v1794 = vpop.f32.mrb[0].mxu0
    %v1795 = vadd.f32 %v1698, %v1794
    %v1796 = vpop.f32.mrb[0].mxu0
    %v1797 = vpop.f32.mrb[0].mxu0
    %v1798 = vadd.f32 %v1701, %v1797
    %v1799 = vpop.f32.mrb[0].mxu0
    %1800 = vdwg.mxu0
    %v1801 = vmax.f32 %v1432, 0.0
    %v1802 = vmax.f32 %v1434, 0.0
    %v1803 = vmax.f32 %v1739, 0.0
    %v1804 = vmax.f32 %v1436, 0.0
    %v1805 = vmax.f32 %v1438, 0.0
    %v1806 = vmax.f32 %v1742, 0.0
    %v1807 = vmax.f32 %v1442, 0.0
    %v1808 = vmax.f32 %v1444, 0.0
    %v1809 = vmax.f32 %v1747, 0.0
    %v1810 = vmax.f32 %v1446, 0.0
    %v1811 = vmax.f32 %v1448, 0.0
    %v1812 = vmax.f32 %v1750, 0.0
    %v1813 = vmax.f32 %v1452, 0.0
    %v1814 = vmax.f32 %v1454, 0.0
    %v1815 = vmax.f32 %v1755, 0.0
    %v1816 = vmax.f32 %v1456, 0.0
    %v1817 = vmax.f32 %v1458, 0.0
    %v1818 = vmax.f32 %v1758, 0.0
    %v1819 = vmax.f32 %v1462, 0.0
    %v1820 = vmax.f32 %v1464, 0.0
    %v1821 = vmax.f32 %v1763, 0.0
    %v1822 = vmax.f32 %v1466, 0.0
    %v1823 = vmax.f32 %v1468, 0.0
    %v1824 = vmax.f32 %v1766, 0.0
    %v1825 = vmax.f32 %v1472, 0.0
    %v1826 = vmax.f32 %v1474, 0.0
    %v1827 = vmax.f32 %v1771, 0.0
    %v1828 = vmax.f32 %v1476, 0.0
    %v1829 = vmax.f32 %v1478, 0.0
    %v1830 = vmax.f32 %v1774, 0.0
    %v1831 = vmax.f32 %v1482, 0.0
    %v1832 = vmax.f32 %v1484, 0.0
    %v1833 = vmax.f32 %v1779, 0.0
    %v1834 = vmax.f32 %v1486, 0.0
    %v1835 = vmax.f32 %v1488, 0.0
    %v1836 = vmax.f32 %v1782, 0.0
    %v1837 = vmax.f32 %v1492, 0.0
    %v1838 = vmax.f32 %v1494, 0.0
    %v1839 = vmax.f32 %v1787, 0.0
    %v1840 = vmax.f32 %v1496, 0.0
    %v1841 = vmax.f32 %v1498, 0.0
    %v1842 = vmax.f32 %v1790, 0.0
    %v1843 = vmax.f32 %v1502, 0.0
    %v1844 = vmax.f32 %v1504, 0.0
    %v1845 = vmax.f32 %v1795, 0.0
    %v1846 = vmax.f32 %v1506, 0.0
    %v1847 = vmax.f32 %v1508, 0.0
    %v1848 = vmax.f32 %v1798, 0.0
    %v1849 = vld [vmem:[%s3] sm:$0x7]
    %v1851 = vlaneseq
    %v1852 = vshrl.u32 %v1851, 7
    %v1853 = vsub.s32 0, %v1852
    %v1854 = vrot.slane %v1849, %v1853
    %v1855 = vlaneseq
    %v1856 = vshrl.u32 %v1855, 7
    %v1857 = vsub.s32 1, %v1856
    %v1858 = vrot.slane %v1849, %v1857
    %v1859 = vlaneseq
    %v1860 = vshrl.u32 %v1859, 7
    %v1861 = vsub.s32 2, %v1860
    %v1862 = vrot.slane %v1849, %v1861
    %v1866 = vmul.f32 %v1801, %v1854
    %v1867 = vmul.f32 %v1802, %v1858
    %v1868 = vmul.f32 %v1803, %v1862
    %v1869 = vmul.f32 %v1804, %v1854
    %v1870 = vmul.f32 %v1805, %v1858
    %v1871 = vmul.f32 %v1806, %v1862
    %v1872 = vmul.f32 %v1807, %v1854
    %v1873 = vmul.f32 %v1808, %v1858
    %v1874 = vmul.f32 %v1809, %v1862
    %v1875 = vmul.f32 %v1810, %v1854
    %v1876 = vmul.f32 %v1811, %v1858
    %v1877 = vmul.f32 %v1812, %v1862
    %v1878 = vmul.f32 %v1813, %v1854
    %v1879 = vmul.f32 %v1814, %v1858
    %v1880 = vmul.f32 %v1815, %v1862
    %v1881 = vmul.f32 %v1816, %v1854
    %v1882 = vmul.f32 %v1817, %v1858
    %v1883 = vmul.f32 %v1818, %v1862
    %v1884 = vmul.f32 %v1819, %v1854
    %v1885 = vmul.f32 %v1820, %v1858
    %v1886 = vmul.f32 %v1821, %v1862
    %v1887 = vmul.f32 %v1822, %v1854
    %v1888 = vmul.f32 %v1823, %v1858
    %v1889 = vmul.f32 %v1824, %v1862
    %v1890 = vmul.f32 %v1825, %v1854
    %v1891 = vmul.f32 %v1826, %v1858
    %v1892 = vmul.f32 %v1827, %v1862
    %v1893 = vmul.f32 %v1828, %v1854
    %v1894 = vmul.f32 %v1829, %v1858
    %v1895 = vmul.f32 %v1830, %v1862
    %v1896 = vmul.f32 %v1831, %v1854
    %v1897 = vmul.f32 %v1832, %v1858
    %v1898 = vmul.f32 %v1833, %v1862
    %v1899 = vmul.f32 %v1834, %v1854
    %v1900 = vmul.f32 %v1835, %v1858
    %v1901 = vmul.f32 %v1836, %v1862
    %v1902 = vmul.f32 %v1837, %v1854
    %v1903 = vmul.f32 %v1838, %v1858
    %v1904 = vmul.f32 %v1839, %v1862
    %v1905 = vmul.f32 %v1840, %v1854
    %v1906 = vmul.f32 %v1841, %v1858
    %v1907 = vmul.f32 %v1842, %v1862
    %v1908 = vmul.f32 %v1843, %v1854
    %v1909 = vmul.f32 %v1844, %v1858
    %v1910 = vmul.f32 %v1845, %v1862
    %v1911 = vmul.f32 %v1846, %v1854
    %v1912 = vmul.f32 %v1847, %v1858
    %v1913 = vmul.f32 %v1848, %v1862
    %v1914 = vadd.f32 %v1866, %v1867
    %v1915 = vadd.f32 %v1914, %v1868
    %1916 = vadd.xlane.f32.xlu0 %v1915
    %v1917 = vpop.xlane.xlu0 %1916
    %v1918 = vadd.f32 %v1869, %v1870
    %v1919 = vadd.f32 %v1918, %v1871
    %1920 = vadd.xlane.f32.xlu0 %v1919
    %v1921 = vpop.xlane.xlu0 %1920
    %v1922 = vadd.f32 %v1872, %v1873
    %v1923 = vadd.f32 %v1922, %v1874
    %1924 = vadd.xlane.f32.xlu0 %v1923
    %v1925 = vpop.xlane.xlu0 %1924
    %v1926 = vadd.f32 %v1875, %v1876
    %v1927 = vadd.f32 %v1926, %v1877
    %1928 = vadd.xlane.f32.xlu0 %v1927
    %v1929 = vpop.xlane.xlu0 %1928
    %v1930 = vadd.f32 %v1878, %v1879
    %v1931 = vadd.f32 %v1930, %v1880
    %1932 = vadd.xlane.f32.xlu0 %v1931
    %v1933 = vpop.xlane.xlu0 %1932
    %v1934 = vadd.f32 %v1881, %v1882
    %v1935 = vadd.f32 %v1934, %v1883
    %1936 = vadd.xlane.f32.xlu0 %v1935
    %v1937 = vpop.xlane.xlu0 %1936
    %v1938 = vadd.f32 %v1884, %v1885
    %v1939 = vadd.f32 %v1938, %v1886
    %1940 = vadd.xlane.f32.xlu0 %v1939
    %v1941 = vpop.xlane.xlu0 %1940
    %v1942 = vadd.f32 %v1887, %v1888
    %v1943 = vadd.f32 %v1942, %v1889
    %1944 = vadd.xlane.f32.xlu0 %v1943
    %v1945 = vpop.xlane.xlu0 %1944
    %v1946 = vadd.f32 %v1890, %v1891
    %v1947 = vadd.f32 %v1946, %v1892
    %1948 = vadd.xlane.f32.xlu0 %v1947
    %v1949 = vpop.xlane.xlu0 %1948
    %v1950 = vadd.f32 %v1893, %v1894
    %v1951 = vadd.f32 %v1950, %v1895
    %1952 = vadd.xlane.f32.xlu0 %v1951
    %v1953 = vpop.xlane.xlu0 %1952
    %v1954 = vadd.f32 %v1896, %v1897
    %v1955 = vadd.f32 %v1954, %v1898
    %1956 = vadd.xlane.f32.xlu0 %v1955
    %v1957 = vpop.xlane.xlu0 %1956
    %v1958 = vadd.f32 %v1899, %v1900
    %v1959 = vadd.f32 %v1958, %v1901
    %1960 = vadd.xlane.f32.xlu0 %v1959
    %v1961 = vpop.xlane.xlu0 %1960
    %v1962 = vadd.f32 %v1902, %v1903
    %v1963 = vadd.f32 %v1962, %v1904
    %1964 = vadd.xlane.f32.xlu0 %v1963
    %v1965 = vpop.xlane.xlu0 %1964
    %v1966 = vadd.f32 %v1905, %v1906
    %v1967 = vadd.f32 %v1966, %v1907
    %1968 = vadd.xlane.f32.xlu0 %v1967
    %v1969 = vpop.xlane.xlu0 %1968
    %v1970 = vadd.f32 %v1908, %v1909
    %v1971 = vadd.f32 %v1970, %v1910
    %1972 = vadd.xlane.f32.xlu0 %v1971
    %v1973 = vpop.xlane.xlu0 %1972
    %v1974 = vadd.f32 %v1911, %v1912
    %v1975 = vadd.f32 %v1974, %v1913
    %1976 = vadd.xlane.f32.xlu0 %v1975
    %v1977 = vpop.xlane.xlu0 %1976
    %s1978 = sld [smem:[#allocation2]]
    %v1979 = vstv %s1978
    %v1980 = vadd.f32 %v1917, %v1979
    %v1981 = vadd.f32 %v1921, %v1979
    %v1982 = vadd.f32 %v1925, %v1979
    %v1983 = vadd.f32 %v1929, %v1979
    %v1984 = vadd.f32 %v1933, %v1979
    %v1985 = vadd.f32 %v1937, %v1979
    %v1986 = vadd.f32 %v1941, %v1979
    %v1987 = vadd.f32 %v1945, %v1979
    %v1988 = vadd.f32 %v1949, %v1979
    %v1989 = vadd.f32 %v1953, %v1979
    %v1990 = vadd.f32 %v1957, %v1979
    %v1991 = vadd.f32 %v1961, %v1979
    %v1992 = vadd.f32 %v1965, %v1979
    %v1993 = vadd.f32 %v1969, %v1979
    %v1994 = vadd.f32 %v1973, %v1979
    %v1995 = vadd.f32 %v1977, %v1979
    %v1996 = vtanh.pop %v1980
    %v1997 = vtanh.pop %v1981
    %v1998 = vtanh.pop %v1982
    %v1999 = vtanh.pop %v1983
    %v2000 = vtanh.pop %v1984
    %v2001 = vtanh.pop %v1985
    %v2002 = vtanh.pop %v1986
    %v2003 = vtanh.pop %v1987
    %v2004 = vtanh.pop %v1988
    %v2005 = vtanh.pop %v1989
    %v2006 = vtanh.pop %v1990
    %v2007 = vtanh.pop %v1991
    %v2008 = vtanh.pop %v1992
    %v2009 = vtanh.pop %v1993
    %v2010 = vtanh.pop %v1994
    %v2011 = vtanh.pop %v1995
    %vm2012 = vcmask 7168
    %2013 = vst.msk [vmem:[%s5] sm:$0xff] %vm2012, %v1996
    %2014 = vst.msk [vmem:[%s5 + $0x8] sm:$0xff] %vm2012, %v1997
    %2015 = vst.msk [vmem:[%s5 + $0x10] sm:$0xff] %vm2012, %v1998
    %2016 = vst.msk [vmem:[%s5 + $0x18] sm:$0xff] %vm2012, %v1999
    %2017 = vst.msk [vmem:[%s5 + $0x20] sm:$0xff] %vm2012, %v2000
    %2018 = vst.msk [vmem:[%s5 + $0x28] sm:$0xff] %vm2012, %v2001
    %2019 = vst.msk [vmem:[%s5 + $0x30] sm:$0xff] %vm2012, %v2002
    %2020 = vst.msk [vmem:[%s5 + $0x38] sm:$0xff] %vm2012, %v2003
    %2021 = vst.msk [vmem:[%s5 + $0x40] sm:$0xff] %vm2012, %v2004
    %2022 = vst.msk [vmem:[%s5 + $0x48] sm:$0xff] %vm2012, %v2005
    %2023 = vst.msk [vmem:[%s5 + $0x50] sm:$0xff] %vm2012, %v2006
    %2024 = vst.msk [vmem:[%s5 + $0x58] sm:$0xff] %vm2012, %v2007
    %2025 = vst.msk [vmem:[%s5 + $0x60] sm:$0xff] %vm2012, %v2008
    %2026 = vst.msk [vmem:[%s5 + $0x68] sm:$0xff] %vm2012, %v2009
    %2027 = vst.msk [vmem:[%s5 + $0x70] sm:$0xff] %vm2012, %v2010
    %2028 = vst.msk [vmem:[%s5 + $0x78] sm:$0xff] %vm2012, %v2011
    // Predicated region
    $region30: #{tpu_custom_call.1} parent=1 // pred_check
      _
    $region31: #{tpu_custom_call.1} parent=1 // pred_check_branch
      %2030 = sbr.rel (0) target = $region33
    $region32: #{tpu_custom_call.1} parent=1 // pred_region
      _
    $region33: #{tpu_custom_call.1} parent=1 // pred_fallthru
      _
    // Predicated region
    $region34: #{tpu_custom_call.1} parent=1 // pred_check
      _
    $region35: #{tpu_custom_call.1} parent=1 // pred_check_branch
      %2032 = sbr.rel (0) target = $region37
    $region36: #{tpu_custom_call.1} parent=1 // pred_region
      _
    $region37: #{tpu_custom_call.1} parent=1 // pred_fallthru
      _
    %2033 = vsyncpa [#allocation4], 1
    %2034 = vsyncpa [#allocation6], 1

</llo_original>
